<compile_context>
chip_gen: v6e
topology: v6e:2x2x1
jax: 0.10.0
libtpu: 0.0.40
codegen_flags: <defaults>
</compile_context>

<pallas_src>
import jax
import jax.numpy as jnp
from jax.experimental import pallas as pl
from jax.experimental.pallas import tpu as pltpu

BN_EPS = 1e-5
NODES = 4

# Deterministic synthetic genotype (op order == self._ops order in PyTorch).
GENOTYPE_FIRST = [
    # node 0 (3 ops, states = [s1, s2, s3])
    ('conv_1x1', 0), ('skip_connect', 1), ('conv_1x1', 2),
    # node 1 (4 ops)
    ('skip_connect', 0), ('conv_1x1', 1), ('skip_connect', 2), ('conv_1x1', 3),
    # node 2 (5 ops)
    ('conv_1x1', 0), ('skip_connect', 2), ('conv_1x1', 3), ('skip_connect', 4), ('conv_1x1', 1),
    # node 3 (6 ops)
    ('skip_connect', 0), ('conv_1x1', 1), ('conv_1x1', 2), ('skip_connect', 3),
    ('conv_1x1', 4), ('skip_connect', 5),
]
GENOTYPE_CONCAT = [3, 4, 5, 6]   # multiplier = 4


def _node_structure():
    """Per-node lists of state indices feeding conv ops / identity skips."""
    node_conv, node_skip = [], []
    offset, n_states = 0, 3
    for _ in range(NODES):
        conv, skip = [], []
        for j in range(n_states):
            name, st = GENOTYPE_FIRST[offset + j]
            (conv if name == 'conv_1x1' else skip).append(st)
        node_conv.append(conv)
        node_skip.append(skip)
        offset += n_states
        n_states += 1
    return node_conv, node_skip


NODE_CONV, NODE_SKIP = _node_structure()


# ----------------------------------------------------------------------------
# Fused Pallas kernel: whole Cell forward for one (batch, lane-tile) block
# ----------------------------------------------------------------------------
def _cell_kernel(x1_ref, x2_ref, x3_ref,
                 wp1_ref, wp2_ref, wp3_ref, bp_ref,
                 wn0_ref, wn1_ref, wn2_ref, wn3_ref, bnode_ref,
                 o_ref):
    # --- preprocess: ReLU -> 1x1x1 conv (BN scale pre-folded into W) -> +bias ---
    states = []
    for col, (x_ref, w_ref) in enumerate(((x1_ref, wp1_ref),
                                          (x2_ref, wp2_ref),
                                          (x3_ref, wp3_ref))):
        x = jnp.maximum(x_ref[...], 0.0)                                   # VPU
        z = jnp.dot(w_ref[...], x, preferred_element_type=jnp.float32)    # MXU
        states.append(z + bp_ref[:, col:col + 1])                         # lane bcast

    node_w = (wn0_ref, wn1_ref, wn2_ref, wn3_ref)

    # ReLU each state at most once, reuse across all consuming conv ops.
    relu_cache = {}

    def relu_of(idx):
        if idx not in relu_cache:
            relu_cache[idx] = jnp.maximum(states[idx], 0.0)
        return relu_cache[idx]

    # --- 4 genotype nodes; all conv ops of a node = one batched MXU matmul ---
    for i in range(NODES):
        conv_idx = NODE_CONV[i]
        if conv_idx:
            if len(conv_idx) == 1:
                conv_in = relu_of(conv_idx[0])
            else:
                conv_in = jnp.concatenate([relu_of(j) for j in conv_idx], axis=0)
            acc = jnp.dot(node_w[i][...], conv_in,
                          preferred_element_type=jnp.float32)
            acc = acc + bnode_ref[:, i:i + 1]
        else:
            acc = jnp.zeros_like(states[0])
        for j in NODE_SKIP[i]:            # Identity ops (drop_path no-op in eval)
            acc = acc + states[j]
        states.append(acc)

    # --- channel concat of states[concat] -> lane-dense (4C, TN) store ---
    o_ref[...] = jnp.concatenate([states[i] for i in GENOTYPE_CONCAT], axis=0)


# ----------------------------------------------------------------------------
# Parameter construction (deterministic; fresh-module defaults for BN stats)
# ----------------------------------------------------------------------------
def _bn_fold(gamma, beta, running_mean, running_var):
    scale = gamma / jnp.sqrt(running_var + BN_EPS)
    bias = beta - running_mean * scale
    return scale.astype(jnp.float32), bias.astype(jnp.float32)


def init_cell_params(key, c1, c2, c3, c):
    keys = jax.random.split(key, 3 + len(GENOTYPE_FIRST))
    fresh_bn = (jnp.ones(c, jnp.float32), jnp.zeros(c, jnp.float32),
                jnp.zeros(c, jnp.float32), jnp.ones(c, jnp.float32))

    params = {}
    raw = {'pre': [], 'ops': []}

    # preprocess: ReLUConvBN(C_i, C, 1, 1, 0, 1, affine=False)
    bp_cols = []
    for i, (name, c_in) in enumerate((('wp1', c1), ('wp2', c2), ('wp3', c3))):
        w = jax.random.normal(keys[i], (c, c_in), jnp.float32) * (1.0 / jnp.sqrt(c_in))
        scale, bias = _bn_fold(*fresh_bn)
        params[name] = w * scale[:, None]          # BN scale folded into conv weight
        bp_cols.append(bias)
        raw['pre'].append((w, scale, bias))
    params['bp'] = jnp.stack(bp_cols, axis=1)      # (C, 3)

    # genotype ops: OPS[name](C, stride=1, affine=True); conv weights of each
    # node concatenated along the input-channel axis, biases summed per node.
    node_ws, node_bs = [], []
    offset, n_states = 0, 3
    for _ in range(NODES):
        ws, b_sum = [], jnp.zeros((c,), jnp.float32)
        for j in range(n_states):
            name, _ = GENOTYPE_FIRST[offset + j]
            if name == 'conv_1x1':
                w = jax.random.normal(keys[3 + offset + j], (c, c), jnp.float32) * (1.0 / jnp.sqrt(c))
                scale, bias = _bn_fold(*fresh_bn)
                ws.append(w * scale[:, None])
                b_sum = b_sum + bias
                raw['ops'].append((w, scale, bias))
            else:
                raw['ops'].append(None)            # Identity
        node_ws.append(jnp.concatenate(ws, axis=1) if ws
                       else jnp.zeros((c, c), jnp.float32))
        node_bs.append(b_sum)
        offset += n_states
        n_states += 1
    params['wn'] = node_ws                         # [(C,2C),(C,2C),(C,3C),(C,3C)]
    params['bn'] = jnp.stack(node_bs, axis=1)      # (C, NODES)
    return params, raw


# ----------------------------------------------------------------------------
# Cell forward: single fused pallas_call, no XLA-side transposes
# ----------------------------------------------------------------------------
def _pick_tn(thw):
    for cand in (1024, 512, 256, 128):
        if thw % cand == 0:
            return cand
    raise ValueError(f"T*H*W={thw} must be a multiple of 128")


def cell_forward(params, s1, s2, s3):
    b, c1, t, h, w = s1.shape
    c2, c3 = s2.shape[1], s3.shape[1]
    thw = t * h * w
    tn = _pick_tn(thw)
    c = params['wp1'].shape[0]
    c_out = len(GENOTYPE_CONCAT) * c

    # NCDHW -> (B, C, T*H*W): contiguous reshape, no transpose / extra HBM pass.
    x1 = s1.reshape(b, c1, thw)
    x2 = s2.reshape(b, c2, thw)
    x3 = s3.reshape(b, c3, thw)
    wn0, wn1, wn2, wn3 = params['wn']

    def _const_spec(arr):
        return pl.BlockSpec(arr.shape, lambda bb, tt: (0, 0))

    out = pl.pallas_call(
        _cell_kernel,
        out_shape=jax.ShapeDtypeStruct((b, c_out, thw), jnp.float32),
        grid_spec=pltpu.PrefetchScalarGridSpec(
            num_scalar_prefetch=0,
            grid=(b, thw // tn),
            in_specs=[
                pl.BlockSpec((None, c1, tn), lambda bb, tt: (bb, 0, tt)),
                pl.BlockSpec((None, c2, tn), lambda bb, tt: (bb, 0, tt)),
                pl.BlockSpec((None, c3, tn), lambda bb, tt: (bb, 0, tt)),
                _const_spec(params['wp1']),
                _const_spec(params['wp2']),
                _const_spec(params['wp3']),
                _const_spec(params['bp']),
                _const_spec(wn0), _const_spec(wn1), _const_spec(wn2), _const_spec(wn3),
                _const_spec(params['bn']),
            ],
            out_specs=pl.BlockSpec((None, c_out, tn), lambda bb, tt: (bb, 0, tt)),
        ),
        compiler_params=pltpu.CompilerParams(
            dimension_semantics=("parallel", "parallel"),   # v7x megacore sharding
            vmem_limit_bytes=32 * 1024 * 1024,              # explicit, fits v7x 64 MiB
        ),
    )(x1, x2, x3,
      params['wp1'], params['wp2'], params['wp3'], params['bp'],
      wn0, wn1, wn2, wn3, params['bn'])

    return out.reshape(b, c_out, t, h, w)   # NCDHW, free reshape


# ----------------------------------------------------------------------------
# Pure-JAX reference (unfused, op-by-op — mirrors the PyTorch module)
# ----------------------------------------------------------------------------
def reference_forward(raw, s1, s2, s3):
    b, _, t, h, w = s1.shape

    def to2d(x):
        return jnp.transpose(x, (1, 0, 2, 3, 4)).reshape(x.shape[1], -1)

    def rcb(x2d, wgt, scale, bias):
        z = jnp.dot(wgt, jnp.maximum(x2d, 0.0), precision=jax.lax.Precision.HIGHEST)
        return z * scale[:, None] + bias[:, None]

    states = [rcb(to2d(s1), *raw['pre'][0]),
              rcb(to2d(s2), *raw['pre'][1]),
              rcb(to2d(s3), *raw['pre'][2])]
    offset = 0
    for _ in range(NODES):
        k = len(states)
        acc = 0.0
        for j in range(k):
            name, st = GENOTYPE_FIRST[offset + j]
            hcur = states[st]
            acc = acc + (hcur if name == 'skip_connect'
                         else rcb(hcur, *raw['ops'][offset + j]))
        states.append(acc)
        offset += k
    out2d = jnp.concatenate([states[i] for i in GENOTYPE_CONCAT], axis=0)
    c_out = out2d.shape[0]
    return jnp.transpose(out2d.reshape(c_out, b, t, h, w), (1, 0, 2, 3, 4))


if __name__ == "__main__":
    key = jax.random.PRNGKey(0)
    k1, k2, k3, kp = jax.random.split(key, 4)
    B, T, H, W = 2, 4, 16, 16            # T*H*W = 1024 -> one 1024-lane tile / batch
    C1, C2, C3, C = 4, 6, 8, 8

    s1 = jax.random.normal(k1, (B, C1, T, H, W), jnp.float32)
    s2 = jax.random.normal(k2, (B, C2, T, H, W), jnp.float32)
    s3 = jax.random.normal(k3, (B, C3, T, H, W), jnp.float32)
    params, raw = init_cell_params(kp, C1, C2, C3, C)

    out = jax.block_until_ready(jax.jit(cell_forward)(params, s1, s2, s3))
    assert out.shape == (B, len(GENOTYPE_CONCAT) * C, T, H, W), out.shape
    assert bool(jnp.all(jnp.isfinite(out)))

    # Cross-check fused kernel vs unfused reference (tolerant of MXU precision).
    ref = reference_forward(raw, s1, s2, s3)
    err = float(jnp.max(jnp.abs(out - ref)))
    denom = float(jnp.max(jnp.abs(ref))) + 1e-6
    assert err / denom < 5e-2, (err, denom)

    print("KERNEL_OK")
</pallas_src>

<mosaic_0001>
module attributes {stable_mosaic.version = 11 : i64} {
  func.func @_cell_kernel(%arg0: i32, %arg1: i32, %arg2: memref<1x4x1024xf32, #tpu.memory_space<vmem>>, %arg3: memref<1x6x1024xf32, #tpu.memory_space<vmem>>, %arg4: memref<1x8x1024xf32, #tpu.memory_space<vmem>>, %arg5: memref<8x4xf32, #tpu.memory_space<vmem>>, %arg6: memref<8x6xf32, #tpu.memory_space<vmem>>, %arg7: memref<8x8xf32, #tpu.memory_space<vmem>>, %arg8: memref<8x3xf32, #tpu.memory_space<vmem>>, %arg9: memref<8x16xf32, #tpu.memory_space<vmem>>, %arg10: memref<8x16xf32, #tpu.memory_space<vmem>>, %arg11: memref<8x24xf32, #tpu.memory_space<vmem>>, %arg12: memref<8x24xf32, #tpu.memory_space<vmem>>, %arg13: memref<8x4xf32, #tpu.memory_space<vmem>>, %arg14: memref<1x32x1024xf32, #tpu.memory_space<vmem>>) attributes {dimension_semantics = [#tpu.dimension_semantics<parallel>, #tpu.dimension_semantics<parallel>], iteration_bounds = array<i64: 2, 1>, scalar_prefetch = 0 : i64, scratch_operands = 0 : i64, tpu.core_type = #tpu.core_type<tc>, window_params = [{transform_indices = @transform_0, window_bounds = array<i64: 1, 4, 1024>}, {transform_indices = @transform_1, window_bounds = array<i64: 1, 6, 1024>}, {transform_indices = @transform_2, window_bounds = array<i64: 1, 8, 1024>}, {pipeline_mode = #tpu.pipeline_mode<synchronous>, transform_indices = @transform_3, window_bounds = array<i64: 8, 4>}, {pipeline_mode = #tpu.pipeline_mode<synchronous>, transform_indices = @transform_4, window_bounds = array<i64: 8, 6>}, {pipeline_mode = #tpu.pipeline_mode<synchronous>, transform_indices = @transform_5, window_bounds = array<i64: 8, 8>}, {pipeline_mode = #tpu.pipeline_mode<synchronous>, transform_indices = @transform_6, window_bounds = array<i64: 8, 3>}, {pipeline_mode = #tpu.pipeline_mode<synchronous>, transform_indices = @transform_7, window_bounds = array<i64: 8, 16>}, {pipeline_mode = #tpu.pipeline_mode<synchronous>, transform_indices = @transform_8, window_bounds = array<i64: 8, 16>}, {pipeline_mode = #tpu.pipeline_mode<synchronous>, transform_indices = @transform_9, window_bounds = array<i64: 8, 24>}, {pipeline_mode = #tpu.pipeline_mode<synchronous>, transform_indices = @transform_10, window_bounds = array<i64: 8, 24>}, {pipeline_mode = #tpu.pipeline_mode<synchronous>, transform_indices = @transform_11, window_bounds = array<i64: 8, 4>}, {transform_indices = @transform_12, window_bounds = array<i64: 1, 32, 1024>}]} {
    %c0 = arith.constant 0 : index
    %c0_0 = arith.constant 0 : index
    %c0_1 = arith.constant 0 : index
    %0 = vector.load %arg2[%c0, %c0_0, %c0_1] : memref<1x4x1024xf32, #tpu.memory_space<vmem>>, vector<1x4x1024xf32>
    %1 = vector.shape_cast %0 : vector<1x4x1024xf32> to vector<4x1024xf32>
    %cst = arith.constant 0.000000e+00 : f32
    %2 = vector.broadcast %cst : f32 to vector<4x1024xf32>
    %3 = arith.maximumf %1, %2 : vector<4x1024xf32>
    %c0_2 = arith.constant 0 : index
    %c0_3 = arith.constant 0 : index
    %4 = vector.load %arg5[%c0_2, %c0_3] : memref<8x4xf32, #tpu.memory_space<vmem>>, vector<8x4xf32>
    %cst_4 = arith.constant dense<0.000000e+00> : vector<8x1024xf32>
    %5 = tpu.matmul %4, %3, %cst_4 {dimension_numbers = #tpu.dot_dimension_numbers<[1], [0], [0], [1], [0, 0, 1, 1], [], []>} : vector<8x4xf32>, vector<4x1024xf32>, vector<8x1024xf32> -> vector<8x1024xf32>
    %c0_5 = arith.constant 0 : index
    %c0_6 = arith.constant 0 : index
    %6 = vector.load %arg8[%c0_5, %c0_6] : memref<8x3xf32, #tpu.memory_space<vmem>>, vector<8x1xf32>
    %7 = vector.broadcast %6 : vector<8x1xf32> to vector<8x1024xf32>
    %8 = arith.addf %5, %7 : vector<8x1024xf32>
    %c0_7 = arith.constant 0 : index
    %c0_8 = arith.constant 0 : index
    %c0_9 = arith.constant 0 : index
    %9 = vector.load %arg3[%c0_7, %c0_8, %c0_9] : memref<1x6x1024xf32, #tpu.memory_space<vmem>>, vector<1x6x1024xf32>
    %10 = vector.shape_cast %9 : vector<1x6x1024xf32> to vector<6x1024xf32>
    %cst_10 = arith.constant 0.000000e+00 : f32
    %11 = vector.broadcast %cst_10 : f32 to vector<6x1024xf32>
    %12 = arith.maximumf %10, %11 : vector<6x1024xf32>
    %c0_11 = arith.constant 0 : index
    %c0_12 = arith.constant 0 : index
    %13 = vector.load %arg6[%c0_11, %c0_12] : memref<8x6xf32, #tpu.memory_space<vmem>>, vector<8x6xf32>
    %cst_13 = arith.constant dense<0.000000e+00> : vector<8x1024xf32>
    %14 = tpu.matmul %13, %12, %cst_13 {dimension_numbers = #tpu.dot_dimension_numbers<[1], [0], [0], [1], [0, 0, 1, 1], [], []>} : vector<8x6xf32>, vector<6x1024xf32>, vector<8x1024xf32> -> vector<8x1024xf32>
    %c0_14 = arith.constant 0 : index
    %c1 = arith.constant 1 : index
    %15 = vector.load %arg8[%c0_14, %c1] : memref<8x3xf32, #tpu.memory_space<vmem>>, vector<8x1xf32>
    %16 = vector.broadcast %15 : vector<8x1xf32> to vector<8x1024xf32>
    %17 = arith.addf %14, %16 : vector<8x1024xf32>
    %c0_15 = arith.constant 0 : index
    %c0_16 = arith.constant 0 : index
    %c0_17 = arith.constant 0 : index
    %18 = vector.load %arg4[%c0_15, %c0_16, %c0_17] : memref<1x8x1024xf32, #tpu.memory_space<vmem>>, vector<1x8x1024xf32>
    %19 = vector.shape_cast %18 : vector<1x8x1024xf32> to vector<8x1024xf32>
    %cst_18 = arith.constant 0.000000e+00 : f32
    %20 = vector.broadcast %cst_18 : f32 to vector<8x1024xf32>
    %21 = arith.maximumf %19, %20 : vector<8x1024xf32>
    %c0_19 = arith.constant 0 : index
    %c0_20 = arith.constant 0 : index
    %22 = vector.load %arg7[%c0_19, %c0_20] : memref<8x8xf32, #tpu.memory_space<vmem>>, vector<8x8xf32>
    %cst_21 = arith.constant dense<0.000000e+00> : vector<8x1024xf32>
    %23 = tpu.matmul %22, %21, %cst_21 {dimension_numbers = #tpu.dot_dimension_numbers<[1], [0], [0], [1], [0, 0, 1, 1], [], []>} : vector<8x8xf32>, vector<8x1024xf32>, vector<8x1024xf32> -> vector<8x1024xf32>
    %c0_22 = arith.constant 0 : index
    %c2 = arith.constant 2 : index
    %24 = vector.load %arg8[%c0_22, %c2] : memref<8x3xf32, #tpu.memory_space<vmem>>, vector<8x1xf32>
    %25 = vector.broadcast %24 : vector<8x1xf32> to vector<8x1024xf32>
    %26 = arith.addf %23, %25 : vector<8x1024xf32>
    %cst_23 = arith.constant 0.000000e+00 : f32
    %27 = vector.broadcast %cst_23 : f32 to vector<8x1024xf32>
    %28 = arith.maximumf %8, %27 : vector<8x1024xf32>
    %cst_24 = arith.constant 0.000000e+00 : f32
    %29 = vector.broadcast %cst_24 : f32 to vector<8x1024xf32>
    %30 = arith.maximumf %26, %29 : vector<8x1024xf32>
    %31 = tpu.concatenate %28, %30 in 0 : vector<8x1024xf32>, vector<8x1024xf32> -> vector<16x1024xf32>
    %c0_25 = arith.constant 0 : index
    %c0_26 = arith.constant 0 : index
    %32 = vector.load %arg9[%c0_25, %c0_26] : memref<8x16xf32, #tpu.memory_space<vmem>>, vector<8x16xf32>
    %cst_27 = arith.constant dense<0.000000e+00> : vector<8x1024xf32>
    %33 = tpu.matmul %32, %31, %cst_27 {dimension_numbers = #tpu.dot_dimension_numbers<[1], [0], [0], [1], [0, 0, 1, 1], [], []>} : vector<8x16xf32>, vector<16x1024xf32>, vector<8x1024xf32> -> vector<8x1024xf32>
    %c0_28 = arith.constant 0 : index
    %c0_29 = arith.constant 0 : index
    %34 = vector.load %arg13[%c0_28, %c0_29] : memref<8x4xf32, #tpu.memory_space<vmem>>, vector<8x1xf32>
    %35 = vector.broadcast %34 : vector<8x1xf32> to vector<8x1024xf32>
    %36 = arith.addf %33, %35 : vector<8x1024xf32>
    %37 = arith.addf %36, %17 : vector<8x1024xf32>
    %cst_30 = arith.constant 0.000000e+00 : f32
    %38 = vector.broadcast %cst_30 : f32 to vector<8x1024xf32>
    %39 = arith.maximumf %17, %38 : vector<8x1024xf32>
    %cst_31 = arith.constant 0.000000e+00 : f32
    %40 = vector.broadcast %cst_31 : f32 to vector<8x1024xf32>
    %41 = arith.maximumf %37, %40 : vector<8x1024xf32>
    %42 = tpu.concatenate %39, %41 in 0 : vector<8x1024xf32>, vector<8x1024xf32> -> vector<16x1024xf32>
    %c0_32 = arith.constant 0 : index
    %c0_33 = arith.constant 0 : index
    %43 = vector.load %arg10[%c0_32, %c0_33] : memref<8x16xf32, #tpu.memory_space<vmem>>, vector<8x16xf32>
    %cst_34 = arith.constant dense<0.000000e+00> : vector<8x1024xf32>
    %44 = tpu.matmul %43, %42, %cst_34 {dimension_numbers = #tpu.dot_dimension_numbers<[1], [0], [0], [1], [0, 0, 1, 1], [], []>} : vector<8x16xf32>, vector<16x1024xf32>, vector<8x1024xf32> -> vector<8x1024xf32>
    %c0_35 = arith.constant 0 : index
    %c1_36 = arith.constant 1 : index
    %45 = vector.load %arg13[%c0_35, %c1_36] : memref<8x4xf32, #tpu.memory_space<vmem>>, vector<8x1xf32>
    %46 = vector.broadcast %45 : vector<8x1xf32> to vector<8x1024xf32>
    %47 = arith.addf %44, %46 : vector<8x1024xf32>
    %48 = arith.addf %47, %8 : vector<8x1024xf32>
    %49 = arith.addf %48, %26 : vector<8x1024xf32>
    %50 = tpu.concatenate %28, %41, %39 in 0 : vector<8x1024xf32>, vector<8x1024xf32>, vector<8x1024xf32> -> vector<24x1024xf32>
    %c0_37 = arith.constant 0 : index
    %c0_38 = arith.constant 0 : index
    %51 = vector.load %arg11[%c0_37, %c0_38] : memref<8x24xf32, #tpu.memory_space<vmem>>, vector<8x24xf32>
    %cst_39 = arith.constant dense<0.000000e+00> : vector<8x1024xf32>
    %52 = tpu.matmul %51, %50, %cst_39 {dimension_numbers = #tpu.dot_dimension_numbers<[1], [0], [0], [1], [0, 0, 1, 1], [], []>} : vector<8x24xf32>, vector<24x1024xf32>, vector<8x1024xf32> -> vector<8x1024xf32>
    %c0_40 = arith.constant 0 : index
    %c2_41 = arith.constant 2 : index
    %53 = vector.load %arg13[%c0_40, %c2_41] : memref<8x4xf32, #tpu.memory_space<vmem>>, vector<8x1xf32>
    %54 = vector.broadcast %53 : vector<8x1xf32> to vector<8x1024xf32>
    %55 = arith.addf %52, %54 : vector<8x1024xf32>
    %56 = arith.addf %55, %26 : vector<8x1024xf32>
    %57 = arith.addf %56, %49 : vector<8x1024xf32>
    %cst_42 = arith.constant 0.000000e+00 : f32
    %58 = vector.broadcast %cst_42 : f32 to vector<8x1024xf32>
    %59 = arith.maximumf %49, %58 : vector<8x1024xf32>
    %60 = tpu.concatenate %39, %30, %59 in 0 : vector<8x1024xf32>, vector<8x1024xf32>, vector<8x1024xf32> -> vector<24x1024xf32>
    %c0_43 = arith.constant 0 : index
    %c0_44 = arith.constant 0 : index
    %61 = vector.load %arg12[%c0_43, %c0_44] : memref<8x24xf32, #tpu.memory_space<vmem>>, vector<8x24xf32>
    %cst_45 = arith.constant dense<0.000000e+00> : vector<8x1024xf32>
    %62 = tpu.matmul %61, %60, %cst_45 {dimension_numbers = #tpu.dot_dimension_numbers<[1], [0], [0], [1], [0, 0, 1, 1], [], []>} : vector<8x24xf32>, vector<24x1024xf32>, vector<8x1024xf32> -> vector<8x1024xf32>
    %c0_46 = arith.constant 0 : index
    %c3 = arith.constant 3 : index
    %63 = vector.load %arg13[%c0_46, %c3] : memref<8x4xf32, #tpu.memory_space<vmem>>, vector<8x1xf32>
    %64 = vector.broadcast %63 : vector<8x1xf32> to vector<8x1024xf32>
    %65 = arith.addf %62, %64 : vector<8x1024xf32>
    %66 = arith.addf %65, %8 : vector<8x1024xf32>
    %67 = arith.addf %66, %37 : vector<8x1024xf32>
    %68 = arith.addf %67, %57 : vector<8x1024xf32>
    %69 = tpu.concatenate %37, %49, %57, %68 in 0 : vector<8x1024xf32>, vector<8x1024xf32>, vector<8x1024xf32>, vector<8x1024xf32> -> vector<32x1024xf32>
    %c0_47 = arith.constant 0 : index
    %c0_48 = arith.constant 0 : index
    %c0_49 = arith.constant 0 : index
    %70 = vector.load %arg14[%c0_47, %c0_48, %c0_49] : memref<1x32x1024xf32, #tpu.memory_space<vmem>>, vector<1x32x1024xf32>
    %71 = vector.shape_cast %70 : vector<1x32x1024xf32> to vector<32x1024xf32>
    %72 = vector.shape_cast %69 : vector<32x1024xf32> to vector<1x32x1024xf32>
    tpu.vector_store %arg14[%c0_47, %c0_48, %c0_49], %72 {strides = array<i32>} : memref<1x32x1024xf32, #tpu.memory_space<vmem>>, vector<1x32x1024xf32>,
    return
  }
  func.func @transform_0(%arg0: i32, %arg1: i32) -> (i32, i32, i32) {
    %c0_i32 = arith.constant 0 : i32
    %c0_i32_0 = arith.constant 0 : i32
    return %arg0, %c0_i32, %arg1 : i32, i32, i32
  }
  func.func @transform_1(%arg0: i32, %arg1: i32) -> (i32, i32, i32) {
    %c0_i32 = arith.constant 0 : i32
    %c0_i32_0 = arith.constant 0 : i32
    return %arg0, %c0_i32, %arg1 : i32, i32, i32
  }
  func.func @transform_2(%arg0: i32, %arg1: i32) -> (i32, i32, i32) {
    %c0_i32 = arith.constant 0 : i32
    %c0_i32_0 = arith.constant 0 : i32
    return %arg0, %c0_i32, %arg1 : i32, i32, i32
  }
  func.func @transform_3(%arg0: i32, %arg1: i32) -> (i32, i32) {
    %c0_i32 = arith.constant 0 : i32
    %c0_i32_0 = arith.constant 0 : i32
    %c0_i32_1 = arith.constant 0 : i32
    return %c0_i32, %c0_i32_0 : i32, i32
  }
  func.func @transform_4(%arg0: i32, %arg1: i32) -> (i32, i32) {
    %c0_i32 = arith.constant 0 : i32
    %c0_i32_0 = arith.constant 0 : i32
    %c0_i32_1 = arith.constant 0 : i32
    return %c0_i32, %c0_i32_0 : i32, i32
  }
  func.func @transform_5(%arg0: i32, %arg1: i32) -> (i32, i32) {
    %c0_i32 = arith.constant 0 : i32
    %c0_i32_0 = arith.constant 0 : i32
    %c0_i32_1 = arith.constant 0 : i32
    return %c0_i32, %c0_i32_0 : i32, i32
  }
  func.func @transform_6(%arg0: i32, %arg1: i32) -> (i32, i32) {
    %c0_i32 = arith.constant 0 : i32
    %c0_i32_0 = arith.constant 0 : i32
    %c0_i32_1 = arith.constant 0 : i32
    return %c0_i32, %c0_i32_0 : i32, i32
  }
  func.func @transform_7(%arg0: i32, %arg1: i32) -> (i32, i32) {
    %c0_i32 = arith.constant 0 : i32
    %c0_i32_0 = arith.constant 0 : i32
    %c0_i32_1 = arith.constant 0 : i32
    return %c0_i32, %c0_i32_0 : i32, i32
  }
  func.func @transform_8(%arg0: i32, %arg1: i32) -> (i32, i32) {
    %c0_i32 = arith.constant 0 : i32
    %c0_i32_0 = arith.constant 0 : i32
    %c0_i32_1 = arith.constant 0 : i32
    return %c0_i32, %c0_i32_0 : i32, i32
  }
  func.func @transform_9(%arg0: i32, %arg1: i32) -> (i32, i32) {
    %c0_i32 = arith.constant 0 : i32
    %c0_i32_0 = arith.constant 0 : i32
    %c0_i32_1 = arith.constant 0 : i32
    return %c0_i32, %c0_i32_0 : i32, i32
  }
  func.func @transform_10(%arg0: i32, %arg1: i32) -> (i32, i32) {
    %c0_i32 = arith.constant 0 : i32
    %c0_i32_0 = arith.constant 0 : i32
    %c0_i32_1 = arith.constant 0 : i32
    return %c0_i32, %c0_i32_0 : i32, i32
  }
  func.func @transform_11(%arg0: i32, %arg1: i32) -> (i32, i32) {
    %c0_i32 = arith.constant 0 : i32
    %c0_i32_0 = arith.constant 0 : i32
    %c0_i32_1 = arith.constant 0 : i32
    return %c0_i32, %c0_i32_0 : i32, i32
  }
  func.func @transform_12(%arg0: i32, %arg1: i32) -> (i32, i32, i32) {
    %c0_i32 = arith.constant 0 : i32
    %c0_i32_0 = arith.constant 0 : i32
    return %arg0, %c0_i32, %arg1 : i32, i32, i32
  }
}

</mosaic_0001>

<llo_original>
// kernel: cell_forward.1
$region0: #{cell_forward.1}
  #allocation0 [shape = 'u32[]', space=smem, size = 0x4, offset = 0x4, fixed_abs, tag = 'smem constant byte address 0x4 - core index']
  #allocation1 [shape = 'u32[144,128]{1,0:T(1,128)}', space=vmem, size = 0x12000, scoped, tag = 'internal scratch']
  %s0 = inlined_call_operand.vmem [shape: f32[2,4,1024], index: 0, kind: input, shape index: {}]
  %s1 = inlined_call_operand.vmem [shape: f32[2,6,1024], index: 1, kind: input, shape index: {}]
  %s2 = inlined_call_operand.vmem [shape: f32[2,8,1024], index: 2, kind: input, shape index: {}]
  %s3 = inlined_call_operand.vmem [shape: f32[8,4], index: 3, kind: input, shape index: {}]
  %s4 = inlined_call_operand.vmem [shape: f32[8,6], index: 4, kind: input, shape index: {}]
  %s5 = inlined_call_operand.vmem [shape: f32[8,8], index: 5, kind: input, shape index: {}]
  %s6 = inlined_call_operand.vmem [shape: f32[8,3], index: 6, kind: input, shape index: {}]
  %s7 = inlined_call_operand.vmem [shape: f32[8,16], index: 7, kind: input, shape index: {}]
  %s8 = inlined_call_operand.vmem [shape: f32[8,16], index: 8, kind: input, shape index: {}]
  %s9 = inlined_call_operand.vmem [shape: f32[8,24], index: 9, kind: input, shape index: {}]
  %s10 = inlined_call_operand.vmem [shape: f32[8,24], index: 10, kind: input, shape index: {}]
  %s11 = inlined_call_operand.vmem [shape: f32[8,4], index: 11, kind: input, shape index: {}]
  %s12 = inlined_call_operand.vmem [shape: f32[2,32,1024], index: 12, kind: output, shape index: {}]
  %s13 = sld [smem:[#allocation0]]
  $region81: #{cell_forward.1} parent=0
    _
  %s15 = ssub.s32 1, %s13
  %s16 = scalar_select 0, %s15, %s13
  loop: start=0, step=1, limit=4
  $region2: #{cell_forward.1} parent=0 // loop_pre_header
    _
  $region3: #{cell_forward.1} parent=0 // loop_header
    %s18 = sphi 0, %s22
    %p19 = scmp.ge.s32.totalorder %s18, 4
    %s25 = sphi 0, %s37
    %s26 = sphi 0, %s33
    %s27 = sphi 0, %s25
    %s28 = sphi 0, %s26
    %s29 = sphi 0, %s27
    %s30 = sphi 0, %s28
    %s42 = sphi 0, %s44
    %s45 = sphi 0, %s42
    %s46 = sphi 0, %s45
    %s62 = sphi 0, %s46
    %s70 = sphi 0, %s72
    %s73 = sphi 0, %s70
    %s74 = sphi 0, %s73
    %s90 = sphi 0, %s74
    %s98 = sphi 0, %s100
    %s101 = sphi 0, %s98
    %s102 = sphi 0, %s101
    %s118 = sphi 0, %s102
    %s122 = sphi 0, %s122
    %s124 = sphi 0, %s122
    %s125 = sphi 0, %s124
    %s139 = sphi 0, %s125
    %s143 = sphi 0, %s143
    %s145 = sphi 0, %s143
    %s146 = sphi 0, %s145
    %s160 = sphi 0, %s146
    %s164 = sphi 0, %s164
    %s166 = sphi 0, %s164
    %s167 = sphi 0, %s166
    %s181 = sphi 0, %s167
    %s185 = sphi 0, %s185
    %s187 = sphi 0, %s185
    %s188 = sphi 0, %s187
    %s202 = sphi 0, %s188
    %s206 = sphi 0, %s206
    %s208 = sphi 0, %s206
    %s209 = sphi 0, %s208
    %s223 = sphi 0, %s209
    %s227 = sphi 0, %s227
    %s229 = sphi 0, %s227
    %s230 = sphi 0, %s229
    %s244 = sphi 0, %s230
    %s248 = sphi 0, %s248
    %s250 = sphi 0, %s248
    %s251 = sphi 0, %s250
    %s265 = sphi 0, %s251
    %s269 = sphi 0, %s269
    %s271 = sphi 0, %s269
    %s272 = sphi 0, %s271
    %s286 = sphi 0, %s272
    %s290 = sphi 0, %s290
    %s292 = sphi 0, %s290
    %s293 = sphi 0, %s292
    %s307 = sphi 0, %s293
    %s315 = sphi 0, %s317
    %s318 = sphi 0, %s315
    %s319 = sphi 0, %s318
    %s335 = sphi 0, %s319
  $region4: #{cell_forward.1} parent=0 // loop_header_branch
    %21 = sbr.rel (%p19) target = $region8
  $region5: #{cell_forward.1} parent=0 // loop_body
    %s23 = ssub.s32 %s18, 1
    %s24 = ssub.s32 %s18, 2
    %s31 = sadd.s32 1, %s26
    %p32 = scmp.ge.s32.totalorder %s31, 1
    %s33 = scalar_select %p32, 0, %s31
    %s34 = sadd.s32 1, %s25
    %s35 = scalar_select %p32, %s34, %s25
    %p36 = scmp.ge.s32.totalorder %s35, 2
    %s37 = scalar_select %p36, 0, %s35
    %s38 = ssub.s32 %s25, %s37
    %s39 = ssub.s32 %s26, %s33
    %s40 = sor.u32 %s38, %s39
    %p41 = scmp.eq.s32.totalorder %s40, 0
    %s43 = sadd.s32 %s42, 1
    %s44 = scalar_select %p41, %s42, %s43
    %p47 = pneg %p41
    %p48 = scmp.eq.s32.totalorder %s18, 1
    %p49 = por %p47, %p48
    %p50 = scmp.ne.s32.totalorder %s42, %s45
    %p51 = scmp.eq.s32.totalorder %s18, 0
    %p52 = por %p50, %p51
    %p53 = scmp.ne.s32.totalorder %s42, %s45
    %p54 = scmp.eq.s32.totalorder %s23, 1
    %p55 = por %p53, %p54
    %p56 = scmp.ne.s32.totalorder %s45, %s46
    %p57 = scmp.eq.s32.totalorder %s23, 0
    %p58 = por %p56, %p57
    %p59 = scmp.ne.s32.totalorder %s45, %s46
    %p60 = scmp.eq.s32.totalorder %s24, 1
    %p61 = por %p59, %p60
    %p63 = scmp.ne.s32.totalorder %s46, %s62
    %p64 = scmp.eq.s32.totalorder %s24, 0
    %p65 = por %p63, %p64
    %s66 = ssub.s32 %s25, %s37
    %s67 = ssub.s32 %s26, %s33
    %s68 = sor.u32 %s66, %s67
    %p69 = scmp.eq.s32.totalorder %s68, 0
    %s71 = sadd.s32 %s70, 1
    %s72 = scalar_select %p69, %s70, %s71
    %p75 = pneg %p69
    %p76 = scmp.eq.s32.totalorder %s18, 1
    %p77 = por %p75, %p76
    %p78 = scmp.ne.s32.totalorder %s70, %s73
    %p79 = scmp.eq.s32.totalorder %s18, 0
    %p80 = por %p78, %p79
    %p81 = scmp.ne.s32.totalorder %s70, %s73
    %p82 = scmp.eq.s32.totalorder %s23, 1
    %p83 = por %p81, %p82
    %p84 = scmp.ne.s32.totalorder %s73, %s74
    %p85 = scmp.eq.s32.totalorder %s23, 0
    %p86 = por %p84, %p85
    %p87 = scmp.ne.s32.totalorder %s73, %s74
    %p88 = scmp.eq.s32.totalorder %s24, 1
    %p89 = por %p87, %p88
    %p91 = scmp.ne.s32.totalorder %s74, %s90
    %p92 = scmp.eq.s32.totalorder %s24, 0
    %p93 = por %p91, %p92
    %s94 = ssub.s32 %s25, %s37
    %s95 = ssub.s32 %s26, %s33
    %s96 = sor.u32 %s94, %s95
    %p97 = scmp.eq.s32.totalorder %s96, 0
    %s99 = sadd.s32 %s98, 1
    %s100 = scalar_select %p97, %s98, %s99
    %p103 = pneg %p97
    %p104 = scmp.eq.s32.totalorder %s18, 1
    %p105 = por %p103, %p104
    %p106 = scmp.ne.s32.totalorder %s98, %s101
    %p107 = scmp.eq.s32.totalorder %s18, 0
    %p108 = por %p106, %p107
    %p109 = scmp.ne.s32.totalorder %s98, %s101
    %p110 = scmp.eq.s32.totalorder %s23, 1
    %p111 = por %p109, %p110
    %p112 = scmp.ne.s32.totalorder %s101, %s102
    %p113 = scmp.eq.s32.totalorder %s23, 0
    %p114 = por %p112, %p113
    %p115 = scmp.ne.s32.totalorder %s101, %s102
    %p116 = scmp.eq.s32.totalorder %s24, 1
    %p117 = por %p115, %p116
    %p119 = scmp.ne.s32.totalorder %s102, %s118
    %p120 = scmp.eq.s32.totalorder %s24, 0
    %p121 = por %p119, %p120
    %s123 = sadd.s32 %s122, 1
    %p126 = scmp.eq.s32.totalorder %s18, 1
    %p127 = scmp.ne.s32.totalorder %s122, %s124
    %p128 = scmp.eq.s32.totalorder %s18, 0
    %p129 = por %p127, %p128
    %p130 = scmp.ne.s32.totalorder %s122, %s124
    %p131 = scmp.eq.s32.totalorder %s23, 1
    %p132 = por %p130, %p131
    %p133 = scmp.ne.s32.totalorder %s124, %s125
    %p134 = scmp.eq.s32.totalorder %s23, 0
    %p135 = por %p133, %p134
    %p136 = scmp.ne.s32.totalorder %s124, %s125
    %p137 = scmp.eq.s32.totalorder %s24, 1
    %p138 = por %p136, %p137
    %p140 = scmp.ne.s32.totalorder %s125, %s139
    %p141 = scmp.eq.s32.totalorder %s24, 0
    %p142 = por %p140, %p141
    %s144 = sadd.s32 %s143, 1
    %p147 = scmp.eq.s32.totalorder %s18, 1
    %p148 = scmp.ne.s32.totalorder %s143, %s145
    %p149 = scmp.eq.s32.totalorder %s18, 0
    %p150 = por %p148, %p149
    %p151 = scmp.ne.s32.totalorder %s143, %s145
    %p152 = scmp.eq.s32.totalorder %s23, 1
    %p153 = por %p151, %p152
    %p154 = scmp.ne.s32.totalorder %s145, %s146
    %p155 = scmp.eq.s32.totalorder %s23, 0
    %p156 = por %p154, %p155
    %p157 = scmp.ne.s32.totalorder %s145, %s146
    %p158 = scmp.eq.s32.totalorder %s24, 1
    %p159 = por %p157, %p158
    %p161 = scmp.ne.s32.totalorder %s146, %s160
    %p162 = scmp.eq.s32.totalorder %s24, 0
    %p163 = por %p161, %p162
    %s165 = sadd.s32 %s164, 1
    %p168 = scmp.eq.s32.totalorder %s18, 1
    %p169 = scmp.ne.s32.totalorder %s164, %s166
    %p170 = scmp.eq.s32.totalorder %s18, 0
    %p171 = por %p169, %p170
    %p172 = scmp.ne.s32.totalorder %s164, %s166
    %p173 = scmp.eq.s32.totalorder %s23, 1
    %p174 = por %p172, %p173
    %p175 = scmp.ne.s32.totalorder %s166, %s167
    %p176 = scmp.eq.s32.totalorder %s23, 0
    %p177 = por %p175, %p176
    %p178 = scmp.ne.s32.totalorder %s166, %s167
    %p179 = scmp.eq.s32.totalorder %s24, 1
    %p180 = por %p178, %p179
    %p182 = scmp.ne.s32.totalorder %s167, %s181
    %p183 = scmp.eq.s32.totalorder %s24, 0
    %p184 = por %p182, %p183
    %s186 = sadd.s32 %s185, 1
    %p189 = scmp.eq.s32.totalorder %s18, 1
    %p190 = scmp.ne.s32.totalorder %s185, %s187
    %p191 = scmp.eq.s32.totalorder %s18, 0
    %p192 = por %p190, %p191
    %p193 = scmp.ne.s32.totalorder %s185, %s187
    %p194 = scmp.eq.s32.totalorder %s23, 1
    %p195 = por %p193, %p194
    %p196 = scmp.ne.s32.totalorder %s187, %s188
    %p197 = scmp.eq.s32.totalorder %s23, 0
    %p198 = por %p196, %p197
    %p199 = scmp.ne.s32.totalorder %s187, %s188
    %p200 = scmp.eq.s32.totalorder %s24, 1
    %p201 = por %p199, %p200
    %p203 = scmp.ne.s32.totalorder %s188, %s202
    %p204 = scmp.eq.s32.totalorder %s24, 0
    %p205 = por %p203, %p204
    %s207 = sadd.s32 %s206, 1
    %p210 = scmp.eq.s32.totalorder %s18, 1
    %p211 = scmp.ne.s32.totalorder %s206, %s208
    %p212 = scmp.eq.s32.totalorder %s18, 0
    %p213 = por %p211, %p212
    %p214 = scmp.ne.s32.totalorder %s206, %s208
    %p215 = scmp.eq.s32.totalorder %s23, 1
    %p216 = por %p214, %p215
    %p217 = scmp.ne.s32.totalorder %s208, %s209
    %p218 = scmp.eq.s32.totalorder %s23, 0
    %p219 = por %p217, %p218
    %p220 = scmp.ne.s32.totalorder %s208, %s209
    %p221 = scmp.eq.s32.totalorder %s24, 1
    %p222 = por %p220, %p221
    %p224 = scmp.ne.s32.totalorder %s209, %s223
    %p225 = scmp.eq.s32.totalorder %s24, 0
    %p226 = por %p224, %p225
    %s228 = sadd.s32 %s227, 1
    %p231 = scmp.eq.s32.totalorder %s18, 1
    %p232 = scmp.ne.s32.totalorder %s227, %s229
    %p233 = scmp.eq.s32.totalorder %s18, 0
    %p234 = por %p232, %p233
    %p235 = scmp.ne.s32.totalorder %s227, %s229
    %p236 = scmp.eq.s32.totalorder %s23, 1
    %p237 = por %p235, %p236
    %p238 = scmp.ne.s32.totalorder %s229, %s230
    %p239 = scmp.eq.s32.totalorder %s23, 0
    %p240 = por %p238, %p239
    %p241 = scmp.ne.s32.totalorder %s229, %s230
    %p242 = scmp.eq.s32.totalorder %s24, 1
    %p243 = por %p241, %p242
    %p245 = scmp.ne.s32.totalorder %s230, %s244
    %p246 = scmp.eq.s32.totalorder %s24, 0
    %p247 = por %p245, %p246
    %s249 = sadd.s32 %s248, 1
    %p252 = scmp.eq.s32.totalorder %s18, 1
    %p253 = scmp.ne.s32.totalorder %s248, %s250
    %p254 = scmp.eq.s32.totalorder %s18, 0
    %p255 = por %p253, %p254
    %p256 = scmp.ne.s32.totalorder %s248, %s250
    %p257 = scmp.eq.s32.totalorder %s23, 1
    %p258 = por %p256, %p257
    %p259 = scmp.ne.s32.totalorder %s250, %s251
    %p260 = scmp.eq.s32.totalorder %s23, 0
    %p261 = por %p259, %p260
    %p262 = scmp.ne.s32.totalorder %s250, %s251
    %p263 = scmp.eq.s32.totalorder %s24, 1
    %p264 = por %p262, %p263
    %p266 = scmp.ne.s32.totalorder %s251, %s265
    %p267 = scmp.eq.s32.totalorder %s24, 0
    %p268 = por %p266, %p267
    %s270 = sadd.s32 %s269, 1
    %p273 = scmp.eq.s32.totalorder %s18, 1
    %p274 = scmp.ne.s32.totalorder %s269, %s271
    %p275 = scmp.eq.s32.totalorder %s18, 0
    %p276 = por %p274, %p275
    %p277 = scmp.ne.s32.totalorder %s269, %s271
    %p278 = scmp.eq.s32.totalorder %s23, 1
    %p279 = por %p277, %p278
    %p280 = scmp.ne.s32.totalorder %s271, %s272
    %p281 = scmp.eq.s32.totalorder %s23, 0
    %p282 = por %p280, %p281
    %p283 = scmp.ne.s32.totalorder %s271, %s272
    %p284 = scmp.eq.s32.totalorder %s24, 1
    %p285 = por %p283, %p284
    %p287 = scmp.ne.s32.totalorder %s272, %s286
    %p288 = scmp.eq.s32.totalorder %s24, 0
    %p289 = por %p287, %p288
    %s291 = sadd.s32 %s290, 1
    %p294 = scmp.eq.s32.totalorder %s18, 1
    %p295 = scmp.ne.s32.totalorder %s290, %s292
    %p296 = scmp.eq.s32.totalorder %s18, 0
    %p297 = por %p295, %p296
    %p298 = scmp.ne.s32.totalorder %s290, %s292
    %p299 = scmp.eq.s32.totalorder %s23, 1
    %p300 = por %p298, %p299
    %p301 = scmp.ne.s32.totalorder %s292, %s293
    %p302 = scmp.eq.s32.totalorder %s23, 0
    %p303 = por %p301, %p302
    %p304 = scmp.ne.s32.totalorder %s292, %s293
    %p305 = scmp.eq.s32.totalorder %s24, 1
    %p306 = por %p304, %p305
    %p308 = scmp.ne.s32.totalorder %s293, %s307
    %p309 = scmp.eq.s32.totalorder %s24, 0
    %p310 = por %p308, %p309
    %s311 = ssub.s32 %s25, %s37
    %s312 = ssub.s32 %s26, %s33
    %s313 = sor.u32 %s311, %s312
    %p314 = scmp.eq.s32.totalorder %s313, 0
    %s316 = sadd.s32 %s315, 1
    %s317 = scalar_select %p314, %s315, %s316
    %p320 = pneg %p314
    %p321 = scmp.eq.s32.totalorder %s18, 1
    %p322 = por %p320, %p321
    %p323 = scmp.ne.s32.totalorder %s315, %s318
    %p324 = scmp.eq.s32.totalorder %s18, 0
    %p325 = por %p323, %p324
    %p326 = scmp.ne.s32.totalorder %s315, %s318
    %p327 = scmp.eq.s32.totalorder %s23, 1
    %p328 = por %p326, %p327
    %p329 = scmp.ne.s32.totalorder %s318, %s319
    %p330 = scmp.eq.s32.totalorder %s23, 0
    %p331 = por %p329, %p330
    %p332 = scmp.ne.s32.totalorder %s318, %s319
    %p333 = scmp.eq.s32.totalorder %s24, 1
    %p334 = por %p332, %p333
    %p336 = scmp.ne.s32.totalorder %s319, %s335
    %p337 = scmp.eq.s32.totalorder %s24, 0
    %p338 = por %p336, %p337
    %p339 = scmp.le.s32.totalorder 1, %s18
    %p340 = scmp.lt.s32.totalorder %s18, 3
    %p341 = pnand %p339, %p340
    %p342 = pneg %p341
    // Predicated region
    $region9: #{cell_forward.1} parent=5 // pred_check
      _
    $region10: #{cell_forward.1} parent=5 // pred_check_branch
      %344 = sbr.rel (%p341) target = $region12
    $region11: #{cell_forward.1} parent=5 // pred_region
      %s345 = ssub.s32 %s18, 1
      // Predicated region
      $region13: #{cell_forward.1} parent=11 // pred_check
        %p346 = pneg %p135
      $region14: #{cell_forward.1} parent=11 // pred_check_branch
        %348 = sbr.rel (%p346) target = $region16
      $region15: #{cell_forward.1} parent=11 // pred_region
        _
      $region16: #{cell_forward.1} parent=11 // pred_fallthru
        _
      // Predicated region
      $region17: #{cell_forward.1} parent=11 // pred_check
        %p349 = pneg %p156
      $region18: #{cell_forward.1} parent=11 // pred_check_branch
        %351 = sbr.rel (%p349) target = $region20
      $region19: #{cell_forward.1} parent=11 // pred_region
        _
      $region20: #{cell_forward.1} parent=11 // pred_fallthru
        _
      // Predicated region
      $region21: #{cell_forward.1} parent=11 // pred_check
        %p352 = pneg %p177
      $region22: #{cell_forward.1} parent=11 // pred_check_branch
        %354 = sbr.rel (%p352) target = $region24
      $region23: #{cell_forward.1} parent=11 // pred_region
        _
      $region24: #{cell_forward.1} parent=11 // pred_fallthru
        _
      // Predicated region
      $region25: #{cell_forward.1} parent=11 // pred_check
        %p355 = pneg %p198
      $region26: #{cell_forward.1} parent=11 // pred_check_branch
        %357 = sbr.rel (%p355) target = $region28
      $region27: #{cell_forward.1} parent=11 // pred_region
        _
      $region28: #{cell_forward.1} parent=11 // pred_fallthru
        _
      // Predicated region
      $region29: #{cell_forward.1} parent=11 // pred_check
        %p358 = pneg %p219
      $region30: #{cell_forward.1} parent=11 // pred_check_branch
        %360 = sbr.rel (%p358) target = $region32
      $region31: #{cell_forward.1} parent=11 // pred_region
        _
      $region32: #{cell_forward.1} parent=11 // pred_fallthru
        _
      // Predicated region
      $region33: #{cell_forward.1} parent=11 // pred_check
        %p361 = pneg %p240
      $region34: #{cell_forward.1} parent=11 // pred_check_branch
        %363 = sbr.rel (%p361) target = $region36
      $region35: #{cell_forward.1} parent=11 // pred_region
        _
      $region36: #{cell_forward.1} parent=11 // pred_fallthru
        _
      // Predicated region
      $region37: #{cell_forward.1} parent=11 // pred_check
        %p364 = pneg %p261
      $region38: #{cell_forward.1} parent=11 // pred_check_branch
        %366 = sbr.rel (%p364) target = $region40
      $region39: #{cell_forward.1} parent=11 // pred_region
        _
      $region40: #{cell_forward.1} parent=11 // pred_fallthru
        _
      // Predicated region
      $region41: #{cell_forward.1} parent=11 // pred_check
        %p367 = pneg %p282
      $region42: #{cell_forward.1} parent=11 // pred_check_branch
        %369 = sbr.rel (%p367) target = $region44
      $region43: #{cell_forward.1} parent=11 // pred_region
        _
      $region44: #{cell_forward.1} parent=11 // pred_fallthru
        _
      // Predicated region
      $region45: #{cell_forward.1} parent=11 // pred_check
        %p370 = pneg %p303
      $region46: #{cell_forward.1} parent=11 // pred_check_branch
        %372 = sbr.rel (%p370) target = $region48
      $region47: #{cell_forward.1} parent=11 // pred_region
        _
      $region48: #{cell_forward.1} parent=11 // pred_fallthru
        _
    $region12: #{cell_forward.1} parent=5 // pred_fallthru
      _
    %p373 = scmp.lt.s32.totalorder %s18, 2
    // Predicated region
    $region49: #{cell_forward.1} parent=5 // pred_check
      %p374 = pneg %p373
    $region50: #{cell_forward.1} parent=5 // pred_check_branch
      %376 = sbr.rel (%p374) target = $region52
    $region51: #{cell_forward.1} parent=5 // pred_region
      // Predicated region
      $region53: #{cell_forward.1} parent=51 // pred_check
        %p377 = pneg %p52
      $region54: #{cell_forward.1} parent=51 // pred_check_branch
        %379 = sbr.rel (%p377) target = $region56
      $region55: #{cell_forward.1} parent=51 // pred_region
        %s380 = smul.u32 8, %s26
        %p381 = scmp.lt.s32.totalorder %s25, 1
        %s382 = scalar_select %p381, %s25, 1
        %p383 = scmp.lt.s32.totalorder %s380, 7
        %s384 = scalar_select %p383, %s380, 7
        %s385 = smul.addr %s382, 8
        %s386 = sadd.s32 %s384, %s385
        %s387 = smul.addr %s386, 4
        %s388 = scalar_lea.vmem %s0, %s387
        %s389 = smul.u32 8, %s26
      $region56: #{cell_forward.1} parent=51 // pred_fallthru
        _
      // Predicated region
      $region57: #{cell_forward.1} parent=51 // pred_check
        %p390 = pneg %p80
      $region58: #{cell_forward.1} parent=51 // pred_check_branch
        %392 = sbr.rel (%p390) target = $region60
      $region59: #{cell_forward.1} parent=51 // pred_region
        %s393 = smul.u32 8, %s26
        %p394 = scmp.lt.s32.totalorder %s25, 1
        %s395 = scalar_select %p394, %s25, 1
        %p396 = scmp.lt.s32.totalorder %s393, 7
        %s397 = scalar_select %p396, %s393, 7
        %s398 = smul.addr %s395, 8
        %s399 = sadd.s32 %s397, %s398
        %s400 = smul.addr %s399, 8
        %s401 = scalar_lea.vmem %s1, %s400
        %s402 = smul.u32 8, %s26
      $region60: #{cell_forward.1} parent=51 // pred_fallthru
        _
      // Predicated region
      $region61: #{cell_forward.1} parent=51 // pred_check
        %p403 = pneg %p108
      $region62: #{cell_forward.1} parent=51 // pred_check_branch
        %405 = sbr.rel (%p403) target = $region64
      $region63: #{cell_forward.1} parent=51 // pred_region
        %s406 = smul.u32 8, %s26
        %p407 = scmp.lt.s32.totalorder %s25, 1
        %s408 = scalar_select %p407, %s25, 1
        %p409 = scmp.lt.s32.totalorder %s406, 7
        %s410 = scalar_select %p409, %s406, 7
        %s411 = smul.addr %s408, 8
        %s412 = sadd.s32 %s410, %s411
        %s413 = smul.addr %s412, 8
        %s414 = scalar_lea.vmem %s2, %s413
        %s415 = smul.u32 8, %s26
      $region64: #{cell_forward.1} parent=51 // pred_fallthru
        _
    $region52: #{cell_forward.1} parent=5 // pred_fallthru
      _
    %p416 = scmp.le.s32.totalorder 1, %s18
    %p417 = scmp.lt.s32.totalorder %s18, 3
    %p418 = pnand %p416, %p417
    %p419 = pneg %p418
    // Predicated region
    $region65: #{cell_forward.1} parent=5 // pred_check
      _
    $region66: #{cell_forward.1} parent=5 // pred_check_branch
      %421 = sbr.rel (%p418) target = $region68
    $region67: #{cell_forward.1} parent=5 // pred_region
      %s422 = ssub.s32 %s18, 1
      %s423 = smul.u32 8, %s28
      %p424 = scmp.lt.s32.totalorder %s27, 1
      %s425 = scalar_select %p424, %s27, 1
      %p426 = scmp.lt.s32.totalorder %s423, 7
      %s427 = scalar_select %p426, %s423, 7
      %s428 = smul.addr %s425, 8
      %s429 = sadd.s32 %s427, %s428
      %s430 = smul.addr %s429, 4
      %s431 = scalar_lea.vmem %s0, %s430
      %p432 = pneg %p58
      %p433 = pneg %p55
      %s434 = smul.u32 8, %s28
      %p435 = scmp.lt.s32.totalorder %s27, 1
      %s436 = scalar_select %p435, %s27, 1
      %p437 = scmp.lt.s32.totalorder %s434, 7
      %s438 = scalar_select %p437, %s434, 7
      %s439 = smul.addr %s436, 8
      %s440 = sadd.s32 %s438, %s439
      %s441 = smul.addr %s440, 8
      %s442 = scalar_lea.vmem %s1, %s441
      %p443 = pneg %p86
      %p444 = pneg %p83
      %s445 = smul.u32 8, %s28
      %p446 = scmp.lt.s32.totalorder %s27, 1
      %s447 = scalar_select %p446, %s27, 1
      %p448 = scmp.lt.s32.totalorder %s445, 7
      %s449 = scalar_select %p448, %s445, 7
      %s450 = smul.addr %s447, 8
      %s451 = sadd.s32 %s449, %s450
      %s452 = smul.addr %s451, 8
      %s453 = scalar_lea.vmem %s2, %s452
      %p454 = pneg %p114
      %p455 = pneg %p111
      %p456 = pneg %p135
      %p457 = pneg %p132
      %p458 = pneg %p156
      %p459 = pneg %p153
      %p460 = pneg %p177
      %p461 = pneg %p174
      %p462 = pneg %p198
      %p463 = pneg %p195
      %p464 = pneg %p219
      %p465 = pneg %p216
      %p466 = pneg %p240
      %p467 = pneg %p237
      %p468 = pneg %p261
      %p469 = pneg %p258
      %p470 = pneg %p282
      %p471 = pneg %p279
      %p472 = pneg %p303
      %p473 = pneg %p300
      %p474 = pneg %p331
      %p475 = pneg %p328
      %s476 = smul.u32 8, %s28
      %p477 = scmp.lt.s32.totalorder %s27, 1
      %s478 = scalar_select %p477, %s27, 1
      %p479 = scmp.lt.s32.totalorder %s476, 7
      %s480 = scalar_select %p479, %s476, 7
      %s481 = smul.addr %s478, 32
      %s482 = sadd.s32 %s480, %s481
      %s483 = smul.addr %s482, 8
      %s484 = scalar_lea.vmem %s12, %s483
      %s485 = smul.u32 8, %s28
      %p486 = scmp.lt.s32.totalorder %s27, 1
      %s487 = scalar_select %p486, %s27, 1
      %p488 = scmp.lt.s32.totalorder %s485, 7
      %s489 = scalar_select %p488, %s485, 7
      %s490 = smul.addr %s487, 8
      %s491 = sadd.s32 %s489, %s490
      %s492 = smul.addr %s491, 4
      %s493 = scalar_lea.vmem %s0, %s492
      %s494 = smul.u32 8, %s28
      %s495 = smul.u32 8, %s28
      %p496 = scmp.lt.s32.totalorder %s27, 1
      %s497 = scalar_select %p496, %s27, 1
      %p498 = scmp.lt.s32.totalorder %s495, 7
      %s499 = scalar_select %p498, %s495, 7
      %s500 = smul.addr %s497, 8
      %s501 = sadd.s32 %s499, %s500
      %s502 = smul.addr %s501, 8
      %s503 = scalar_lea.vmem %s1, %s502
      %s504 = smul.u32 8, %s28
      %s505 = smul.u32 8, %s28
      %p506 = scmp.lt.s32.totalorder %s27, 1
      %s507 = scalar_select %p506, %s27, 1
      %p508 = scmp.lt.s32.totalorder %s505, 7
      %s509 = scalar_select %p508, %s505, 7
      %s510 = smul.addr %s507, 8
      %s511 = sadd.s32 %s509, %s510
      %s512 = smul.addr %s511, 8
      %s513 = scalar_lea.vmem %s2, %s512
      %s514 = smul.u32 8, %s28
      %s515 = smul.u32 8, %s28
      %p516 = scmp.lt.s32.totalorder %s27, 1
      %s517 = scalar_select %p516, %s27, 1
      %p518 = scmp.lt.s32.totalorder %s515, 7
      %s519 = scalar_select %p518, %s515, 7
      %s520 = smul.addr %s517, 32
      %s521 = sadd.s32 %s519, %s520
      %s522 = smul.addr %s521, 8
      %s523 = scalar_lea.vmem %s12, %s522
      %s524 = smul.u32 8, %s28
      %v525 = vld [vmem:[%s493] sm:$0xff]
      %v526 = vld [vmem:[%s493 + $0x8] sm:$0xff]
      %v527 = vld [vmem:[%s493 + $0x10] sm:$0xff]
      %v528 = vld [vmem:[%s493 + $0x18] sm:$0xff]
      %v529 = vmax.f32 %v525, 0.0
      %v530 = vmax.f32 %v526, 0.0
      %v531 = vmax.f32 %v527, 0.0
      %v532 = vmax.f32 %v528, 0.0
      %v533 = vld [vmem:[%s3] sm:$0xff]
      %v534 = vld [vmem:[%s6] sm:$0xff]
      %536 = vset.pattern.permute.xlu0 0
      %537 = vperm.xlu0 %536, %v534
      %v538 = vpop.permute.xlu0 %537
      %v544 = vcombine.high %v529, %v529
      %v545 = vcombine.high %v530, %v530
      %v546 = vcombine.high %v531, %v531
      %v547 = vcombine.high %v532, %v532
      %vm548 = vcmask 31744
      %v550 = vsel %vm548, %v533, 0
      %vm552 = vcmask 1043456
      %v553 = vsel %vm552, %v529, 0
      %v555 = vsel %vm552, %v544, 0
      %v557 = vsel %vm552, %v530, 0
      %v559 = vsel %vm552, %v545, 0
      %v561 = vsel %vm552, %v531, 0
      %v563 = vsel %vm552, %v546, 0
      %v565 = vsel %vm552, %v532, 0
      %v567 = vsel %vm552, %v547, 0
      %569 = vmatprep.subr.mxu0 0.0
      %570 = vmatpush1.msra.mxu0 0.0
      %571 = vmatprep.subr.mxu0 0.0
      %572 = vmatpush1.msra.mxu0 0.0
      %573 = vmatprep.subr.mxu0 0.0
      %574 = vmatpush1.msra.mxu0 0.0
      %575 = vmatprep.subr.mxu0 0.0
      %576 = vmatpush1.msra.mxu0 0.0
      %577 = vmatprep.subr.mxu0 0.0
      %578 = vmatpush1.msra.mxu0 0.0
      %579 = vmatprep.subr.mxu0 0.0
      %580 = vmatpush1.msra.mxu0 0.0
      %581 = vmatprep.subr.mxu0 0.0
      %582 = vmatpush1.msra.mxu0 0.0
      %583 = vmatprep.subr.mxu0 0.0
      %584 = vmatpush1.msra.mxu0 0.0
      %585 = vmatprep.subr.mxu0 0.0
      %586 = vmatpush1.msra.mxu0 0.0
      %587 = vmatprep.subr.mxu0 0.0
      %588 = vmatpush1.msra.mxu0 0.0
      %589 = vmatprep.subr.mxu0 0.0
      %590 = vmatpush1.msra.mxu0 0.0
      %591 = vmatprep.subr.mxu0 0.0
      %592 = vmatpush1.msra.mxu0 0.0
      %593 = vmatprep.subr.mxu0 0.0
      %594 = vmatpush1.msra.mxu0 0.0
      %595 = vmatprep.subr.mxu0 0.0
      %596 = vmatpush1.msra.mxu0 0.0
      %597 = vmatprep.subr.mxu0 0.0
      %598 = vmatpush1.msra.mxu0 0.0
      %599 = vmatprep.subr.mxu0 %v555
      %600 = vmatpush1.msra.mxu0 %v553
      %601 = vmatprep.subr.mxu0 0.0
      %602 = vmatpush2.msra.mxu0 0.0
      %603 = vmatprep.subr.mxu0 0.0
      %604 = vmatpush2.msra.mxu0 0.0
      %605 = vmatprep.subr.mxu0 0.0
      %606 = vmatpush2.msra.mxu0 0.0
      %607 = vmatprep.subr.mxu0 0.0
      %608 = vmatpush2.msra.mxu0 0.0
      %609 = vmatprep.subr.mxu0 0.0
      %610 = vmatpush2.msra.mxu0 0.0
      %611 = vmatprep.subr.mxu0 0.0
      %612 = vmatpush2.msra.mxu0 0.0
      %613 = vmatprep.subr.mxu0 0.0
      %614 = vmatpush2.msra.mxu0 0.0
      %615 = vmatprep.subr.mxu0 0.0
      %616 = vmatpush2.msra.mxu0 0.0
      %617 = vmatprep.subr.mxu0 0.0
      %618 = vmatpush2.msra.mxu0 0.0
      %619 = vmatprep.subr.mxu0 0.0
      %620 = vmatpush2.msra.mxu0 0.0
      %621 = vmatprep.subr.mxu0 0.0
      %622 = vmatpush2.msra.mxu0 0.0
      %623 = vmatprep.subr.mxu0 0.0
      %624 = vmatpush2.msra.mxu0 0.0
      %625 = vmatprep.subr.mxu0 0.0
      %626 = vmatpush2.msra.mxu0 0.0
      %627 = vmatprep.subr.mxu0 0.0
      %628 = vmatpush2.msra.mxu0 0.0
      %629 = vmatprep.subr.mxu0 0.0
      %630 = vmatpush2.msra.mxu0 0.0
      %631 = vmatprep.subr.mxu0 0.0
      %632 = vmatpush2.msra.mxu0 0.0
      %633 = vmatprep.mubr.f32.mxu0 0.0
      %634 = vmatmul.mubr.f32.gmra.mxu0 %v550
      %v635 = vpop.f32.mrf.mxu0
      %v636 = vadd.f32 %v538, %v635
      %v637 = vpop.f32.mrf.mxu0
      %v638 = vadd.f32 %v538, %v637
      %639 = vdwg.mxu0
      %640 = vmatprep.subr.mxu0 0.0
      %641 = vmatpush1.msra.mxu0 0.0
      %642 = vmatprep.subr.mxu0 0.0
      %643 = vmatpush1.msra.mxu0 0.0
      %644 = vmatprep.subr.mxu0 0.0
      %645 = vmatpush1.msra.mxu0 0.0
      %646 = vmatprep.subr.mxu0 0.0
      %647 = vmatpush1.msra.mxu0 0.0
      %648 = vmatprep.subr.mxu0 0.0
      %649 = vmatpush1.msra.mxu0 0.0
      %650 = vmatprep.subr.mxu0 0.0
      %651 = vmatpush1.msra.mxu0 0.0
      %652 = vmatprep.subr.mxu0 0.0
      %653 = vmatpush1.msra.mxu0 0.0
      %654 = vmatprep.subr.mxu0 0.0
      %655 = vmatpush1.msra.mxu0 0.0
      %656 = vmatprep.subr.mxu0 0.0
      %657 = vmatpush1.msra.mxu0 0.0
      %658 = vmatprep.subr.mxu0 0.0
      %659 = vmatpush1.msra.mxu0 0.0
      %660 = vmatprep.subr.mxu0 0.0
      %661 = vmatpush1.msra.mxu0 0.0
      %662 = vmatprep.subr.mxu0 0.0
      %663 = vmatpush1.msra.mxu0 0.0
      %664 = vmatprep.subr.mxu0 0.0
      %665 = vmatpush1.msra.mxu0 0.0
      %666 = vmatprep.subr.mxu0 0.0
      %667 = vmatpush1.msra.mxu0 0.0
      %668 = vmatprep.subr.mxu0 0.0
      %669 = vmatpush1.msra.mxu0 0.0
      %670 = vmatprep.subr.mxu0 %v559
      %671 = vmatpush1.msra.mxu0 %v557
      %672 = vmatprep.subr.mxu0 0.0
      %673 = vmatpush2.msra.mxu0 0.0
      %674 = vmatprep.subr.mxu0 0.0
      %675 = vmatpush2.msra.mxu0 0.0
      %676 = vmatprep.subr.mxu0 0.0
      %677 = vmatpush2.msra.mxu0 0.0
      %678 = vmatprep.subr.mxu0 0.0
      %679 = vmatpush2.msra.mxu0 0.0
      %680 = vmatprep.subr.mxu0 0.0
      %681 = vmatpush2.msra.mxu0 0.0
      %682 = vmatprep.subr.mxu0 0.0
      %683 = vmatpush2.msra.mxu0 0.0
      %684 = vmatprep.subr.mxu0 0.0
      %685 = vmatpush2.msra.mxu0 0.0
      %686 = vmatprep.subr.mxu0 0.0
      %687 = vmatpush2.msra.mxu0 0.0
      %688 = vmatprep.subr.mxu0 0.0
      %689 = vmatpush2.msra.mxu0 0.0
      %690 = vmatprep.subr.mxu0 0.0
      %691 = vmatpush2.msra.mxu0 0.0
      %692 = vmatprep.subr.mxu0 0.0
      %693 = vmatpush2.msra.mxu0 0.0
      %694 = vmatprep.subr.mxu0 0.0
      %695 = vmatpush2.msra.mxu0 0.0
      %696 = vmatprep.subr.mxu0 0.0
      %697 = vmatpush2.msra.mxu0 0.0
      %698 = vmatprep.subr.mxu0 0.0
      %699 = vmatpush2.msra.mxu0 0.0
      %700 = vmatprep.subr.mxu0 0.0
      %701 = vmatpush2.msra.mxu0 0.0
      %702 = vmatprep.subr.mxu0 0.0
      %703 = vmatpush2.msra.mxu0 0.0
      %704 = vmatprep.mubr.f32.mxu0 0.0
      %705 = vmatmul.mubr.f32.gmra.mxu0 %v550
      %v706 = vpop.f32.mrf.mxu0
      %v707 = vadd.f32 %v538, %v706
      %v708 = vpop.f32.mrf.mxu0
      %v709 = vadd.f32 %v538, %v708
      %710 = vdwg.mxu0
      %711 = vmatprep.subr.mxu0 0.0
      %712 = vmatpush1.msra.mxu0 0.0
      %713 = vmatprep.subr.mxu0 0.0
      %714 = vmatpush1.msra.mxu0 0.0
      %715 = vmatprep.subr.mxu0 0.0
      %716 = vmatpush1.msra.mxu0 0.0
      %717 = vmatprep.subr.mxu0 0.0
      %718 = vmatpush1.msra.mxu0 0.0
      %719 = vmatprep.subr.mxu0 0.0
      %720 = vmatpush1.msra.mxu0 0.0
      %721 = vmatprep.subr.mxu0 0.0
      %722 = vmatpush1.msra.mxu0 0.0
      %723 = vmatprep.subr.mxu0 0.0
      %724 = vmatpush1.msra.mxu0 0.0
      %725 = vmatprep.subr.mxu0 0.0
      %726 = vmatpush1.msra.mxu0 0.0
      %727 = vmatprep.subr.mxu0 0.0
      %728 = vmatpush1.msra.mxu0 0.0
      %729 = vmatprep.subr.mxu0 0.0
      %730 = vmatpush1.msra.mxu0 0.0
      %731 = vmatprep.subr.mxu0 0.0
      %732 = vmatpush1.msra.mxu0 0.0
      %733 = vmatprep.subr.mxu0 0.0
      %734 = vmatpush1.msra.mxu0 0.0
      %735 = vmatprep.subr.mxu0 0.0
      %736 = vmatpush1.msra.mxu0 0.0
      %737 = vmatprep.subr.mxu0 0.0
      %738 = vmatpush1.msra.mxu0 0.0
      %739 = vmatprep.subr.mxu0 0.0
      %740 = vmatpush1.msra.mxu0 0.0
      %741 = vmatprep.subr.mxu0 %v563
      %742 = vmatpush1.msra.mxu0 %v561
      %743 = vmatprep.subr.mxu0 0.0
      %744 = vmatpush2.msra.mxu0 0.0
      %745 = vmatprep.subr.mxu0 0.0
      %746 = vmatpush2.msra.mxu0 0.0
      %747 = vmatprep.subr.mxu0 0.0
      %748 = vmatpush2.msra.mxu0 0.0
      %749 = vmatprep.subr.mxu0 0.0
      %750 = vmatpush2.msra.mxu0 0.0
      %751 = vmatprep.subr.mxu0 0.0
      %752 = vmatpush2.msra.mxu0 0.0
      %753 = vmatprep.subr.mxu0 0.0
      %754 = vmatpush2.msra.mxu0 0.0
      %755 = vmatprep.subr.mxu0 0.0
      %756 = vmatpush2.msra.mxu0 0.0
      %757 = vmatprep.subr.mxu0 0.0
      %758 = vmatpush2.msra.mxu0 0.0
      %759 = vmatprep.subr.mxu0 0.0
      %760 = vmatpush2.msra.mxu0 0.0
      %761 = vmatprep.subr.mxu0 0.0
      %762 = vmatpush2.msra.mxu0 0.0
      %763 = vmatprep.subr.mxu0 0.0
      %764 = vmatpush2.msra.mxu0 0.0
      %765 = vmatprep.subr.mxu0 0.0
      %766 = vmatpush2.msra.mxu0 0.0
      %767 = vmatprep.subr.mxu0 0.0
      %768 = vmatpush2.msra.mxu0 0.0
      %769 = vmatprep.subr.mxu0 0.0
      %770 = vmatpush2.msra.mxu0 0.0
      %771 = vmatprep.subr.mxu0 0.0
      %772 = vmatpush2.msra.mxu0 0.0
      %773 = vmatprep.subr.mxu0 0.0
      %774 = vmatpush2.msra.mxu0 0.0
      %775 = vmatprep.mubr.f32.mxu0 0.0
      %776 = vmatmul.mubr.f32.gmra.mxu0 %v550
      %v777 = vpop.f32.mrf.mxu0
      %v778 = vadd.f32 %v538, %v777
      %v779 = vpop.f32.mrf.mxu0
      %v780 = vadd.f32 %v538, %v779
      %781 = vdwg.mxu0
      %782 = vmatprep.subr.mxu0 0.0
      %783 = vmatpush1.msra.mxu0 0.0
      %784 = vmatprep.subr.mxu0 0.0
      %785 = vmatpush1.msra.mxu0 0.0
      %786 = vmatprep.subr.mxu0 0.0
      %787 = vmatpush1.msra.mxu0 0.0
      %788 = vmatprep.subr.mxu0 0.0
      %789 = vmatpush1.msra.mxu0 0.0
      %790 = vmatprep.subr.mxu0 0.0
      %791 = vmatpush1.msra.mxu0 0.0
      %792 = vmatprep.subr.mxu0 0.0
      %793 = vmatpush1.msra.mxu0 0.0
      %794 = vmatprep.subr.mxu0 0.0
      %795 = vmatpush1.msra.mxu0 0.0
      %796 = vmatprep.subr.mxu0 0.0
      %797 = vmatpush1.msra.mxu0 0.0
      %798 = vmatprep.subr.mxu0 0.0
      %799 = vmatpush1.msra.mxu0 0.0
      %800 = vmatprep.subr.mxu0 0.0
      %801 = vmatpush1.msra.mxu0 0.0
      %802 = vmatprep.subr.mxu0 0.0
      %803 = vmatpush1.msra.mxu0 0.0
      %804 = vmatprep.subr.mxu0 0.0
      %805 = vmatpush1.msra.mxu0 0.0
      %806 = vmatprep.subr.mxu0 0.0
      %807 = vmatpush1.msra.mxu0 0.0
      %808 = vmatprep.subr.mxu0 0.0
      %809 = vmatpush1.msra.mxu0 0.0
      %810 = vmatprep.subr.mxu0 0.0
      %811 = vmatpush1.msra.mxu0 0.0
      %812 = vmatprep.subr.mxu0 %v567
      %813 = vmatpush1.msra.mxu0 %v565
      %814 = vmatprep.subr.mxu0 0.0
      %815 = vmatpush2.msra.mxu0 0.0
      %816 = vmatprep.subr.mxu0 0.0
      %817 = vmatpush2.msra.mxu0 0.0
      %818 = vmatprep.subr.mxu0 0.0
      %819 = vmatpush2.msra.mxu0 0.0
      %820 = vmatprep.subr.mxu0 0.0
      %821 = vmatpush2.msra.mxu0 0.0
      %822 = vmatprep.subr.mxu0 0.0
      %823 = vmatpush2.msra.mxu0 0.0
      %824 = vmatprep.subr.mxu0 0.0
      %825 = vmatpush2.msra.mxu0 0.0
      %826 = vmatprep.subr.mxu0 0.0
      %827 = vmatpush2.msra.mxu0 0.0
      %828 = vmatprep.subr.mxu0 0.0
      %829 = vmatpush2.msra.mxu0 0.0
      %830 = vmatprep.subr.mxu0 0.0
      %831 = vmatpush2.msra.mxu0 0.0
      %832 = vmatprep.subr.mxu0 0.0
      %833 = vmatpush2.msra.mxu0 0.0
      %834 = vmatprep.subr.mxu0 0.0
      %835 = vmatpush2.msra.mxu0 0.0
      %836 = vmatprep.subr.mxu0 0.0
      %837 = vmatpush2.msra.mxu0 0.0
      %838 = vmatprep.subr.mxu0 0.0
      %839 = vmatpush2.msra.mxu0 0.0
      %840 = vmatprep.subr.mxu0 0.0
      %841 = vmatpush2.msra.mxu0 0.0
      %842 = vmatprep.subr.mxu0 0.0
      %843 = vmatpush2.msra.mxu0 0.0
      %844 = vmatprep.subr.mxu0 0.0
      %845 = vmatpush2.msra.mxu0 0.0
      %846 = vmatprep.mubr.f32.mxu0 0.0
      %847 = vmatmul.mubr.f32.gmra.mxu0 %v550
      %v848 = vpop.f32.mrf.mxu0
      %v849 = vadd.f32 %v538, %v848
      %v850 = vpop.f32.mrf.mxu0
      %v851 = vadd.f32 %v538, %v850
      %852 = vdwg.mxu0
      %v853 = vld [vmem:[%s503] sm:$0x3f]
      %v854 = vld [vmem:[%s503 + $0x8] sm:$0x3f]
      %v855 = vld [vmem:[%s503 + $0x10] sm:$0x3f]
      %v856 = vld [vmem:[%s503 + $0x18] sm:$0x3f]
      %v857 = vld [vmem:[%s503 + $0x20] sm:$0x3f]
      %v858 = vld [vmem:[%s503 + $0x28] sm:$0x3f]
      %v859 = vld [vmem:[%s503 + $0x30] sm:$0x3f]
      %v860 = vld [vmem:[%s503 + $0x38] sm:$0x3f]
      %v861 = vmax.f32 %v853, 0.0
      %v862 = vmax.f32 %v854, 0.0
      %v863 = vmax.f32 %v855, 0.0
      %v864 = vmax.f32 %v856, 0.0
      %v865 = vmax.f32 %v857, 0.0
      %v866 = vmax.f32 %v858, 0.0
      %v867 = vmax.f32 %v859, 0.0
      %v868 = vmax.f32 %v860, 0.0
      %v869 = vld [vmem:[%s4] sm:$0xff]
      %v870 = vld [vmem:[%s6] sm:$0xff]
      %872 = vset.pattern.permute.xlu0 1
      %873 = vperm.xlu0 %872, %v870
      %v874 = vpop.permute.xlu0 %873
      %vm876 = vcmask 48128
      %v878 = vsel %vm876, %v869, 0
      %vm880 = vcmask 1045504
      %v882 = vsel %vm880, %v861, 0
      %v885 = vsel %vm880, %v862, 0
      %v888 = vsel %vm880, %v863, 0
      %v891 = vsel %vm880, %v864, 0
      %v894 = vsel %vm880, %v865, 0
      %v897 = vsel %vm880, %v866, 0
      %v900 = vsel %vm880, %v867, 0
      %v903 = vsel %vm880, %v868, 0
      %905 = vmatprep.subr.mxu0 0.0
      %906 = vmatpush1.msra.mxu0 0.0
      %907 = vmatprep.subr.mxu0 0.0
      %908 = vmatpush1.msra.mxu0 0.0
      %909 = vmatprep.subr.mxu0 0.0
      %910 = vmatpush1.msra.mxu0 0.0
      %911 = vmatprep.subr.mxu0 0.0
      %912 = vmatpush1.msra.mxu0 0.0
      %913 = vmatprep.subr.mxu0 0.0
      %914 = vmatpush1.msra.mxu0 0.0
      %915 = vmatprep.subr.mxu0 0.0
      %916 = vmatpush1.msra.mxu0 0.0
      %917 = vmatprep.subr.mxu0 0.0
      %918 = vmatpush1.msra.mxu0 0.0
      %919 = vmatprep.subr.mxu0 0.0
      %920 = vmatpush1.msra.mxu0 0.0
      %921 = vmatprep.subr.mxu0 0.0
      %922 = vmatpush1.msra.mxu0 0.0
      %923 = vmatprep.subr.mxu0 0.0
      %924 = vmatpush1.msra.mxu0 0.0
      %925 = vmatprep.subr.mxu0 0.0
      %926 = vmatpush1.msra.mxu0 0.0
      %927 = vmatprep.subr.mxu0 0.0
      %928 = vmatpush1.msra.mxu0 0.0
      %929 = vmatprep.subr.mxu0 0.0
      %930 = vmatpush1.msra.mxu0 0.0
      %931 = vmatprep.subr.mxu0 0.0
      %932 = vmatpush1.msra.mxu0 0.0
      %933 = vmatprep.subr.mxu0 0.0
      %934 = vmatpush1.msra.mxu0 0.0
      %935 = vmatprep.subr.mxu0 %v885
      %936 = vmatpush1.msra.mxu0 %v882
      %937 = vmatprep.subr.mxu0 0.0
      %938 = vmatpush2.msra.mxu0 0.0
      %939 = vmatprep.subr.mxu0 0.0
      %940 = vmatpush2.msra.mxu0 0.0
      %941 = vmatprep.subr.mxu0 0.0
      %942 = vmatpush2.msra.mxu0 0.0
      %943 = vmatprep.subr.mxu0 0.0
      %944 = vmatpush2.msra.mxu0 0.0
      %945 = vmatprep.subr.mxu0 0.0
      %946 = vmatpush2.msra.mxu0 0.0
      %947 = vmatprep.subr.mxu0 0.0
      %948 = vmatpush2.msra.mxu0 0.0
      %949 = vmatprep.subr.mxu0 0.0
      %950 = vmatpush2.msra.mxu0 0.0
      %951 = vmatprep.subr.mxu0 0.0
      %952 = vmatpush2.msra.mxu0 0.0
      %953 = vmatprep.subr.mxu0 0.0
      %954 = vmatpush2.msra.mxu0 0.0
      %955 = vmatprep.subr.mxu0 0.0
      %956 = vmatpush2.msra.mxu0 0.0
      %957 = vmatprep.subr.mxu0 0.0
      %958 = vmatpush2.msra.mxu0 0.0
      %959 = vmatprep.subr.mxu0 0.0
      %960 = vmatpush2.msra.mxu0 0.0
      %961 = vmatprep.subr.mxu0 0.0
      %962 = vmatpush2.msra.mxu0 0.0
      %963 = vmatprep.subr.mxu0 0.0
      %964 = vmatpush2.msra.mxu0 0.0
      %965 = vmatprep.subr.mxu0 0.0
      %966 = vmatpush2.msra.mxu0 0.0
      %967 = vmatprep.subr.mxu0 0.0
      %968 = vmatpush2.msra.mxu0 0.0
      %969 = vmatprep.mubr.f32.mxu0 0.0
      %970 = vmatmul.mubr.f32.gmra.mxu0 %v878
      %v971 = vpop.f32.mrf.mxu0
      %v972 = vadd.f32 %v874, %v971
      %v973 = vpop.f32.mrf.mxu0
      %v974 = vadd.f32 %v874, %v973
      %975 = vdwg.mxu0
      %976 = vmatprep.subr.mxu0 0.0
      %977 = vmatpush1.msra.mxu0 0.0
      %978 = vmatprep.subr.mxu0 0.0
      %979 = vmatpush1.msra.mxu0 0.0
      %980 = vmatprep.subr.mxu0 0.0
      %981 = vmatpush1.msra.mxu0 0.0
      %982 = vmatprep.subr.mxu0 0.0
      %983 = vmatpush1.msra.mxu0 0.0
      %984 = vmatprep.subr.mxu0 0.0
      %985 = vmatpush1.msra.mxu0 0.0
      %986 = vmatprep.subr.mxu0 0.0
      %987 = vmatpush1.msra.mxu0 0.0
      %988 = vmatprep.subr.mxu0 0.0
      %989 = vmatpush1.msra.mxu0 0.0
      %990 = vmatprep.subr.mxu0 0.0
      %991 = vmatpush1.msra.mxu0 0.0
      %992 = vmatprep.subr.mxu0 0.0
      %993 = vmatpush1.msra.mxu0 0.0
      %994 = vmatprep.subr.mxu0 0.0
      %995 = vmatpush1.msra.mxu0 0.0
      %996 = vmatprep.subr.mxu0 0.0
      %997 = vmatpush1.msra.mxu0 0.0
      %998 = vmatprep.subr.mxu0 0.0
      %999 = vmatpush1.msra.mxu0 0.0
      %1000 = vmatprep.subr.mxu0 0.0
      %1001 = vmatpush1.msra.mxu0 0.0
      %1002 = vmatprep.subr.mxu0 0.0
      %1003 = vmatpush1.msra.mxu0 0.0
      %1004 = vmatprep.subr.mxu0 0.0
      %1005 = vmatpush1.msra.mxu0 0.0
      %1006 = vmatprep.subr.mxu0 %v891
      %1007 = vmatpush1.msra.mxu0 %v888
      %1008 = vmatprep.subr.mxu0 0.0
      %1009 = vmatpush2.msra.mxu0 0.0
      %1010 = vmatprep.subr.mxu0 0.0
      %1011 = vmatpush2.msra.mxu0 0.0
      %1012 = vmatprep.subr.mxu0 0.0
      %1013 = vmatpush2.msra.mxu0 0.0
      %1014 = vmatprep.subr.mxu0 0.0
      %1015 = vmatpush2.msra.mxu0 0.0
      %1016 = vmatprep.subr.mxu0 0.0
      %1017 = vmatpush2.msra.mxu0 0.0
      %1018 = vmatprep.subr.mxu0 0.0
      %1019 = vmatpush2.msra.mxu0 0.0
      %1020 = vmatprep.subr.mxu0 0.0
      %1021 = vmatpush2.msra.mxu0 0.0
      %1022 = vmatprep.subr.mxu0 0.0
      %1023 = vmatpush2.msra.mxu0 0.0
      %1024 = vmatprep.subr.mxu0 0.0
      %1025 = vmatpush2.msra.mxu0 0.0
      %1026 = vmatprep.subr.mxu0 0.0
      %1027 = vmatpush2.msra.mxu0 0.0
      %1028 = vmatprep.subr.mxu0 0.0
      %1029 = vmatpush2.msra.mxu0 0.0
      %1030 = vmatprep.subr.mxu0 0.0
      %1031 = vmatpush2.msra.mxu0 0.0
      %1032 = vmatprep.subr.mxu0 0.0
      %1033 = vmatpush2.msra.mxu0 0.0
      %1034 = vmatprep.subr.mxu0 0.0
      %1035 = vmatpush2.msra.mxu0 0.0
      %1036 = vmatprep.subr.mxu0 0.0
      %1037 = vmatpush2.msra.mxu0 0.0
      %1038 = vmatprep.subr.mxu0 0.0
      %1039 = vmatpush2.msra.mxu0 0.0
      %1040 = vmatprep.mubr.f32.mxu0 0.0
      %1041 = vmatmul.mubr.f32.gmra.mxu0 %v878
      %v1042 = vpop.f32.mrf.mxu0
      %v1043 = vadd.f32 %v874, %v1042
      %v1044 = vpop.f32.mrf.mxu0
      %v1045 = vadd.f32 %v874, %v1044
      %1046 = vdwg.mxu0
      %1047 = vmatprep.subr.mxu0 0.0
      %1048 = vmatpush1.msra.mxu0 0.0
      %1049 = vmatprep.subr.mxu0 0.0
      %1050 = vmatpush1.msra.mxu0 0.0
      %1051 = vmatprep.subr.mxu0 0.0
      %1052 = vmatpush1.msra.mxu0 0.0
      %1053 = vmatprep.subr.mxu0 0.0
      %1054 = vmatpush1.msra.mxu0 0.0
      %1055 = vmatprep.subr.mxu0 0.0
      %1056 = vmatpush1.msra.mxu0 0.0
      %1057 = vmatprep.subr.mxu0 0.0
      %1058 = vmatpush1.msra.mxu0 0.0
      %1059 = vmatprep.subr.mxu0 0.0
      %1060 = vmatpush1.msra.mxu0 0.0
      %1061 = vmatprep.subr.mxu0 0.0
      %1062 = vmatpush1.msra.mxu0 0.0
      %1063 = vmatprep.subr.mxu0 0.0
      %1064 = vmatpush1.msra.mxu0 0.0
      %1065 = vmatprep.subr.mxu0 0.0
      %1066 = vmatpush1.msra.mxu0 0.0
      %1067 = vmatprep.subr.mxu0 0.0
      %1068 = vmatpush1.msra.mxu0 0.0
      %1069 = vmatprep.subr.mxu0 0.0
      %1070 = vmatpush1.msra.mxu0 0.0
      %1071 = vmatprep.subr.mxu0 0.0
      %1072 = vmatpush1.msra.mxu0 0.0
      %1073 = vmatprep.subr.mxu0 0.0
      %1074 = vmatpush1.msra.mxu0 0.0
      %1075 = vmatprep.subr.mxu0 0.0
      %1076 = vmatpush1.msra.mxu0 0.0
      %1077 = vmatprep.subr.mxu0 %v897
      %1078 = vmatpush1.msra.mxu0 %v894
      %1079 = vmatprep.subr.mxu0 0.0
      %1080 = vmatpush2.msra.mxu0 0.0
      %1081 = vmatprep.subr.mxu0 0.0
      %1082 = vmatpush2.msra.mxu0 0.0
      %1083 = vmatprep.subr.mxu0 0.0
      %1084 = vmatpush2.msra.mxu0 0.0
      %1085 = vmatprep.subr.mxu0 0.0
      %1086 = vmatpush2.msra.mxu0 0.0
      %1087 = vmatprep.subr.mxu0 0.0
      %1088 = vmatpush2.msra.mxu0 0.0
      %1089 = vmatprep.subr.mxu0 0.0
      %1090 = vmatpush2.msra.mxu0 0.0
      %1091 = vmatprep.subr.mxu0 0.0
      %1092 = vmatpush2.msra.mxu0 0.0
      %1093 = vmatprep.subr.mxu0 0.0
      %1094 = vmatpush2.msra.mxu0 0.0
      %1095 = vmatprep.subr.mxu0 0.0
      %1096 = vmatpush2.msra.mxu0 0.0
      %1097 = vmatprep.subr.mxu0 0.0
      %1098 = vmatpush2.msra.mxu0 0.0
      %1099 = vmatprep.subr.mxu0 0.0
      %1100 = vmatpush2.msra.mxu0 0.0
      %1101 = vmatprep.subr.mxu0 0.0
      %1102 = vmatpush2.msra.mxu0 0.0
      %1103 = vmatprep.subr.mxu0 0.0
      %1104 = vmatpush2.msra.mxu0 0.0
      %1105 = vmatprep.subr.mxu0 0.0
      %1106 = vmatpush2.msra.mxu0 0.0
      %1107 = vmatprep.subr.mxu0 0.0
      %1108 = vmatpush2.msra.mxu0 0.0
      %1109 = vmatprep.subr.mxu0 0.0
      %1110 = vmatpush2.msra.mxu0 0.0
      %1111 = vmatprep.mubr.f32.mxu0 0.0
      %1112 = vmatmul.mubr.f32.gmra.mxu0 %v878
      %v1113 = vpop.f32.mrf.mxu0
      %v1114 = vadd.f32 %v874, %v1113
      %v1115 = vpop.f32.mrf.mxu0
      %v1116 = vadd.f32 %v874, %v1115
      %1117 = vdwg.mxu0
      %1118 = vmatprep.subr.mxu0 0.0
      %1119 = vmatpush1.msra.mxu0 0.0
      %1120 = vmatprep.subr.mxu0 0.0
      %1121 = vmatpush1.msra.mxu0 0.0
      %1122 = vmatprep.subr.mxu0 0.0
      %1123 = vmatpush1.msra.mxu0 0.0
      %1124 = vmatprep.subr.mxu0 0.0
      %1125 = vmatpush1.msra.mxu0 0.0
      %1126 = vmatprep.subr.mxu0 0.0
      %1127 = vmatpush1.msra.mxu0 0.0
      %1128 = vmatprep.subr.mxu0 0.0
      %1129 = vmatpush1.msra.mxu0 0.0
      %1130 = vmatprep.subr.mxu0 0.0
      %1131 = vmatpush1.msra.mxu0 0.0
      %1132 = vmatprep.subr.mxu0 0.0
      %1133 = vmatpush1.msra.mxu0 0.0
      %1134 = vmatprep.subr.mxu0 0.0
      %1135 = vmatpush1.msra.mxu0 0.0
      %1136 = vmatprep.subr.mxu0 0.0
      %1137 = vmatpush1.msra.mxu0 0.0
      %1138 = vmatprep.subr.mxu0 0.0
      %1139 = vmatpush1.msra.mxu0 0.0
      %1140 = vmatprep.subr.mxu0 0.0
      %1141 = vmatpush1.msra.mxu0 0.0
      %1142 = vmatprep.subr.mxu0 0.0
      %1143 = vmatpush1.msra.mxu0 0.0
      %1144 = vmatprep.subr.mxu0 0.0
      %1145 = vmatpush1.msra.mxu0 0.0
      %1146 = vmatprep.subr.mxu0 0.0
      %1147 = vmatpush1.msra.mxu0 0.0
      %1148 = vmatprep.subr.mxu0 %v903
      %1149 = vmatpush1.msra.mxu0 %v900
      %1150 = vmatprep.subr.mxu0 0.0
      %1151 = vmatpush2.msra.mxu0 0.0
      %1152 = vmatprep.subr.mxu0 0.0
      %1153 = vmatpush2.msra.mxu0 0.0
      %1154 = vmatprep.subr.mxu0 0.0
      %1155 = vmatpush2.msra.mxu0 0.0
      %1156 = vmatprep.subr.mxu0 0.0
      %1157 = vmatpush2.msra.mxu0 0.0
      %1158 = vmatprep.subr.mxu0 0.0
      %1159 = vmatpush2.msra.mxu0 0.0
      %1160 = vmatprep.subr.mxu0 0.0
      %1161 = vmatpush2.msra.mxu0 0.0
      %1162 = vmatprep.subr.mxu0 0.0
      %1163 = vmatpush2.msra.mxu0 0.0
      %1164 = vmatprep.subr.mxu0 0.0
      %1165 = vmatpush2.msra.mxu0 0.0
      %1166 = vmatprep.subr.mxu0 0.0
      %1167 = vmatpush2.msra.mxu0 0.0
      %1168 = vmatprep.subr.mxu0 0.0
      %1169 = vmatpush2.msra.mxu0 0.0
      %1170 = vmatprep.subr.mxu0 0.0
      %1171 = vmatpush2.msra.mxu0 0.0
      %1172 = vmatprep.subr.mxu0 0.0
      %1173 = vmatpush2.msra.mxu0 0.0
      %1174 = vmatprep.subr.mxu0 0.0
      %1175 = vmatpush2.msra.mxu0 0.0
      %1176 = vmatprep.subr.mxu0 0.0
      %1177 = vmatpush2.msra.mxu0 0.0
      %1178 = vmatprep.subr.mxu0 0.0
      %1179 = vmatpush2.msra.mxu0 0.0
      %1180 = vmatprep.subr.mxu0 0.0
      %1181 = vmatpush2.msra.mxu0 0.0
      %1182 = vmatprep.mubr.f32.mxu0 0.0
      %1183 = vmatmul.mubr.f32.gmra.mxu0 %v878
      %v1184 = vpop.f32.mrf.mxu0
      %v1185 = vadd.f32 %v874, %v1184
      %v1186 = vpop.f32.mrf.mxu0
      %v1187 = vadd.f32 %v874, %v1186
      %1188 = vdwg.mxu0
      %v1189 = vld [vmem:[%s513] sm:$0xff]
      %v1190 = vld [vmem:[%s513 + $0x8] sm:$0xff]
      %v1191 = vld [vmem:[%s513 + $0x10] sm:$0xff]
      %v1192 = vld [vmem:[%s513 + $0x18] sm:$0xff]
      %v1193 = vld [vmem:[%s513 + $0x20] sm:$0xff]
      %v1194 = vld [vmem:[%s513 + $0x28] sm:$0xff]
      %v1195 = vld [vmem:[%s513 + $0x30] sm:$0xff]
      %v1196 = vld [vmem:[%s513 + $0x38] sm:$0xff]
      %v1197 = vmax.f32 %v1189, 0.0
      %v1198 = vmax.f32 %v1190, 0.0
      %v1199 = vmax.f32 %v1191, 0.0
      %v1200 = vmax.f32 %v1192, 0.0
      %v1201 = vmax.f32 %v1193, 0.0
      %v1202 = vmax.f32 %v1194, 0.0
      %v1203 = vmax.f32 %v1195, 0.0
      %v1204 = vmax.f32 %v1196, 0.0
      %v1205 = vld [vmem:[%s5] sm:$0xff]
      %1206 = vset.pattern.permute.xlu0 2
      %1207 = vperm.xlu0 %1206, %v870
      %v1208 = vpop.permute.xlu0 %1207
      %vm1210 = vcmask 64512
      %v1212 = vsel %vm1210, %v1205, 0
      %1214 = vmatprep.subr.mxu0 0.0
      %1215 = vmatpush1.msra.mxu0 0.0
      %1216 = vmatprep.subr.mxu0 0.0
      %1217 = vmatpush1.msra.mxu0 0.0
      %1218 = vmatprep.subr.mxu0 0.0
      %1219 = vmatpush1.msra.mxu0 0.0
      %1220 = vmatprep.subr.mxu0 0.0
      %1221 = vmatpush1.msra.mxu0 0.0
      %1222 = vmatprep.subr.mxu0 0.0
      %1223 = vmatpush1.msra.mxu0 0.0
      %1224 = vmatprep.subr.mxu0 0.0
      %1225 = vmatpush1.msra.mxu0 0.0
      %1226 = vmatprep.subr.mxu0 0.0
      %1227 = vmatpush1.msra.mxu0 0.0
      %1228 = vmatprep.subr.mxu0 0.0
      %1229 = vmatpush1.msra.mxu0 0.0
      %1230 = vmatprep.subr.mxu0 0.0
      %1231 = vmatpush1.msra.mxu0 0.0
      %1232 = vmatprep.subr.mxu0 0.0
      %1233 = vmatpush1.msra.mxu0 0.0
      %1234 = vmatprep.subr.mxu0 0.0
      %1235 = vmatpush1.msra.mxu0 0.0
      %1236 = vmatprep.subr.mxu0 0.0
      %1237 = vmatpush1.msra.mxu0 0.0
      %1238 = vmatprep.subr.mxu0 0.0
      %1239 = vmatpush1.msra.mxu0 0.0
      %1240 = vmatprep.subr.mxu0 0.0
      %1241 = vmatpush1.msra.mxu0 0.0
      %1242 = vmatprep.subr.mxu0 0.0
      %1243 = vmatpush1.msra.mxu0 0.0
      %1244 = vmatprep.subr.mxu0 %v1198
      %1245 = vmatpush1.msra.mxu0 %v1197
      %1246 = vmatprep.subr.mxu0 0.0
      %1247 = vmatpush2.msra.mxu0 0.0
      %1248 = vmatprep.subr.mxu0 0.0
      %1249 = vmatpush2.msra.mxu0 0.0
      %1250 = vmatprep.subr.mxu0 0.0
      %1251 = vmatpush2.msra.mxu0 0.0
      %1252 = vmatprep.subr.mxu0 0.0
      %1253 = vmatpush2.msra.mxu0 0.0
      %1254 = vmatprep.subr.mxu0 0.0
      %1255 = vmatpush2.msra.mxu0 0.0
      %1256 = vmatprep.subr.mxu0 0.0
      %1257 = vmatpush2.msra.mxu0 0.0
      %1258 = vmatprep.subr.mxu0 0.0
      %1259 = vmatpush2.msra.mxu0 0.0
      %1260 = vmatprep.subr.mxu0 0.0
      %1261 = vmatpush2.msra.mxu0 0.0
      %1262 = vmatprep.subr.mxu0 0.0
      %1263 = vmatpush2.msra.mxu0 0.0
      %1264 = vmatprep.subr.mxu0 0.0
      %1265 = vmatpush2.msra.mxu0 0.0
      %1266 = vmatprep.subr.mxu0 0.0
      %1267 = vmatpush2.msra.mxu0 0.0
      %1268 = vmatprep.subr.mxu0 0.0
      %1269 = vmatpush2.msra.mxu0 0.0
      %1270 = vmatprep.subr.mxu0 0.0
      %1271 = vmatpush2.msra.mxu0 0.0
      %1272 = vmatprep.subr.mxu0 0.0
      %1273 = vmatpush2.msra.mxu0 0.0
      %1274 = vmatprep.subr.mxu0 0.0
      %1275 = vmatpush2.msra.mxu0 0.0
      %1276 = vmatprep.subr.mxu0 0.0
      %1277 = vmatpush2.msra.mxu0 0.0
      %1278 = vmatprep.mubr.f32.mxu0 0.0
      %1279 = vmatmul.mubr.f32.gmra.mxu0 %v1212
      %v1280 = vpop.f32.mrf.mxu0
      %v1281 = vadd.f32 %v1208, %v1280
      %v1282 = vpop.f32.mrf.mxu0
      %v1283 = vadd.f32 %v1208, %v1282
      %1284 = vdwg.mxu0
      %1285 = vmatprep.subr.mxu0 0.0
      %1286 = vmatpush1.msra.mxu0 0.0
      %1287 = vmatprep.subr.mxu0 0.0
      %1288 = vmatpush1.msra.mxu0 0.0
      %1289 = vmatprep.subr.mxu0 0.0
      %1290 = vmatpush1.msra.mxu0 0.0
      %1291 = vmatprep.subr.mxu0 0.0
      %1292 = vmatpush1.msra.mxu0 0.0
      %1293 = vmatprep.subr.mxu0 0.0
      %1294 = vmatpush1.msra.mxu0 0.0
      %1295 = vmatprep.subr.mxu0 0.0
      %1296 = vmatpush1.msra.mxu0 0.0
      %1297 = vmatprep.subr.mxu0 0.0
      %1298 = vmatpush1.msra.mxu0 0.0
      %1299 = vmatprep.subr.mxu0 0.0
      %1300 = vmatpush1.msra.mxu0 0.0
      %1301 = vmatprep.subr.mxu0 0.0
      %1302 = vmatpush1.msra.mxu0 0.0
      %1303 = vmatprep.subr.mxu0 0.0
      %1304 = vmatpush1.msra.mxu0 0.0
      %1305 = vmatprep.subr.mxu0 0.0
      %1306 = vmatpush1.msra.mxu0 0.0
      %1307 = vmatprep.subr.mxu0 0.0
      %1308 = vmatpush1.msra.mxu0 0.0
      %1309 = vmatprep.subr.mxu0 0.0
      %1310 = vmatpush1.msra.mxu0 0.0
      %1311 = vmatprep.subr.mxu0 0.0
      %1312 = vmatpush1.msra.mxu0 0.0
      %1313 = vmatprep.subr.mxu0 0.0
      %1314 = vmatpush1.msra.mxu0 0.0
      %1315 = vmatprep.subr.mxu0 %v1200
      %1316 = vmatpush1.msra.mxu0 %v1199
      %1317 = vmatprep.subr.mxu0 0.0
      %1318 = vmatpush2.msra.mxu0 0.0
      %1319 = vmatprep.subr.mxu0 0.0
      %1320 = vmatpush2.msra.mxu0 0.0
      %1321 = vmatprep.subr.mxu0 0.0
      %1322 = vmatpush2.msra.mxu0 0.0
      %1323 = vmatprep.subr.mxu0 0.0
      %1324 = vmatpush2.msra.mxu0 0.0
      %1325 = vmatprep.subr.mxu0 0.0
      %1326 = vmatpush2.msra.mxu0 0.0
      %1327 = vmatprep.subr.mxu0 0.0
      %1328 = vmatpush2.msra.mxu0 0.0
      %1329 = vmatprep.subr.mxu0 0.0
      %1330 = vmatpush2.msra.mxu0 0.0
      %1331 = vmatprep.subr.mxu0 0.0
      %1332 = vmatpush2.msra.mxu0 0.0
      %1333 = vmatprep.subr.mxu0 0.0
      %1334 = vmatpush2.msra.mxu0 0.0
      %1335 = vmatprep.subr.mxu0 0.0
      %1336 = vmatpush2.msra.mxu0 0.0
      %1337 = vmatprep.subr.mxu0 0.0
      %1338 = vmatpush2.msra.mxu0 0.0
      %1339 = vmatprep.subr.mxu0 0.0
      %1340 = vmatpush2.msra.mxu0 0.0
      %1341 = vmatprep.subr.mxu0 0.0
      %1342 = vmatpush2.msra.mxu0 0.0
      %1343 = vmatprep.subr.mxu0 0.0
      %1344 = vmatpush2.msra.mxu0 0.0
      %1345 = vmatprep.subr.mxu0 0.0
      %1346 = vmatpush2.msra.mxu0 0.0
      %1347 = vmatprep.subr.mxu0 0.0
      %1348 = vmatpush2.msra.mxu0 0.0
      %1349 = vmatprep.mubr.f32.mxu0 0.0
      %1350 = vmatmul.mubr.f32.gmra.mxu0 %v1212
      %v1351 = vpop.f32.mrf.mxu0
      %v1352 = vadd.f32 %v1208, %v1351
      %v1353 = vpop.f32.mrf.mxu0
      %v1354 = vadd.f32 %v1208, %v1353
      %1355 = vdwg.mxu0
      %1356 = vmatprep.subr.mxu0 0.0
      %1357 = vmatpush1.msra.mxu0 0.0
      %1358 = vmatprep.subr.mxu0 0.0
      %1359 = vmatpush1.msra.mxu0 0.0
      %1360 = vmatprep.subr.mxu0 0.0
      %1361 = vmatpush1.msra.mxu0 0.0
      %1362 = vmatprep.subr.mxu0 0.0
      %1363 = vmatpush1.msra.mxu0 0.0
      %1364 = vmatprep.subr.mxu0 0.0
      %1365 = vmatpush1.msra.mxu0 0.0
      %1366 = vmatprep.subr.mxu0 0.0
      %1367 = vmatpush1.msra.mxu0 0.0
      %1368 = vmatprep.subr.mxu0 0.0
      %1369 = vmatpush1.msra.mxu0 0.0
      %1370 = vmatprep.subr.mxu0 0.0
      %1371 = vmatpush1.msra.mxu0 0.0
      %1372 = vmatprep.subr.mxu0 0.0
      %1373 = vmatpush1.msra.mxu0 0.0
      %1374 = vmatprep.subr.mxu0 0.0
      %1375 = vmatpush1.msra.mxu0 0.0
      %1376 = vmatprep.subr.mxu0 0.0
      %1377 = vmatpush1.msra.mxu0 0.0
      %1378 = vmatprep.subr.mxu0 0.0
      %1379 = vmatpush1.msra.mxu0 0.0
      %1380 = vmatprep.subr.mxu0 0.0
      %1381 = vmatpush1.msra.mxu0 0.0
      %1382 = vmatprep.subr.mxu0 0.0
      %1383 = vmatpush1.msra.mxu0 0.0
      %1384 = vmatprep.subr.mxu0 0.0
      %1385 = vmatpush1.msra.mxu0 0.0
      %1386 = vmatprep.subr.mxu0 %v1202
      %1387 = vmatpush1.msra.mxu0 %v1201
      %1388 = vmatprep.subr.mxu0 0.0
      %1389 = vmatpush2.msra.mxu0 0.0
      %1390 = vmatprep.subr.mxu0 0.0
      %1391 = vmatpush2.msra.mxu0 0.0
      %1392 = vmatprep.subr.mxu0 0.0
      %1393 = vmatpush2.msra.mxu0 0.0
      %1394 = vmatprep.subr.mxu0 0.0
      %1395 = vmatpush2.msra.mxu0 0.0
      %1396 = vmatprep.subr.mxu0 0.0
      %1397 = vmatpush2.msra.mxu0 0.0
      %1398 = vmatprep.subr.mxu0 0.0
      %1399 = vmatpush2.msra.mxu0 0.0
      %1400 = vmatprep.subr.mxu0 0.0
      %1401 = vmatpush2.msra.mxu0 0.0
      %1402 = vmatprep.subr.mxu0 0.0
      %1403 = vmatpush2.msra.mxu0 0.0
      %1404 = vmatprep.subr.mxu0 0.0
      %1405 = vmatpush2.msra.mxu0 0.0
      %1406 = vmatprep.subr.mxu0 0.0
      %1407 = vmatpush2.msra.mxu0 0.0
      %1408 = vmatprep.subr.mxu0 0.0
      %1409 = vmatpush2.msra.mxu0 0.0
      %1410 = vmatprep.subr.mxu0 0.0
      %1411 = vmatpush2.msra.mxu0 0.0
      %1412 = vmatprep.subr.mxu0 0.0
      %1413 = vmatpush2.msra.mxu0 0.0
      %1414 = vmatprep.subr.mxu0 0.0
      %1415 = vmatpush2.msra.mxu0 0.0
      %1416 = vmatprep.subr.mxu0 0.0
      %1417 = vmatpush2.msra.mxu0 0.0
      %1418 = vmatprep.subr.mxu0 0.0
      %1419 = vmatpush2.msra.mxu0 0.0
      %1420 = vmatprep.mubr.f32.mxu0 0.0
      %1421 = vmatmul.mubr.f32.gmra.mxu0 %v1212
      %v1422 = vpop.f32.mrf.mxu0
      %v1423 = vadd.f32 %v1208, %v1422
      %v1424 = vpop.f32.mrf.mxu0
      %v1425 = vadd.f32 %v1208, %v1424
      %1426 = vdwg.mxu0
      %1427 = vmatprep.subr.mxu0 0.0
      %1428 = vmatpush1.msra.mxu0 0.0
      %1429 = vmatprep.subr.mxu0 0.0
      %1430 = vmatpush1.msra.mxu0 0.0
      %1431 = vmatprep.subr.mxu0 0.0
      %1432 = vmatpush1.msra.mxu0 0.0
      %1433 = vmatprep.subr.mxu0 0.0
      %1434 = vmatpush1.msra.mxu0 0.0
      %1435 = vmatprep.subr.mxu0 0.0
      %1436 = vmatpush1.msra.mxu0 0.0
      %1437 = vmatprep.subr.mxu0 0.0
      %1438 = vmatpush1.msra.mxu0 0.0
      %1439 = vmatprep.subr.mxu0 0.0
      %1440 = vmatpush1.msra.mxu0 0.0
      %1441 = vmatprep.subr.mxu0 0.0
      %1442 = vmatpush1.msra.mxu0 0.0
      %1443 = vmatprep.subr.mxu0 0.0
      %1444 = vmatpush1.msra.mxu0 0.0
      %1445 = vmatprep.subr.mxu0 0.0
      %1446 = vmatpush1.msra.mxu0 0.0
      %1447 = vmatprep.subr.mxu0 0.0
      %1448 = vmatpush1.msra.mxu0 0.0
      %1449 = vmatprep.subr.mxu0 0.0
      %1450 = vmatpush1.msra.mxu0 0.0
      %1451 = vmatprep.subr.mxu0 0.0
      %1452 = vmatpush1.msra.mxu0 0.0
      %1453 = vmatprep.subr.mxu0 0.0
      %1454 = vmatpush1.msra.mxu0 0.0
      %1455 = vmatprep.subr.mxu0 0.0
      %1456 = vmatpush1.msra.mxu0 0.0
      %1457 = vmatprep.subr.mxu0 %v1204
      %1458 = vmatpush1.msra.mxu0 %v1203
      %1459 = vmatprep.subr.mxu0 0.0
      %1460 = vmatpush2.msra.mxu0 0.0
      %1461 = vmatprep.subr.mxu0 0.0
      %1462 = vmatpush2.msra.mxu0 0.0
      %1463 = vmatprep.subr.mxu0 0.0
      %1464 = vmatpush2.msra.mxu0 0.0
      %1465 = vmatprep.subr.mxu0 0.0
      %1466 = vmatpush2.msra.mxu0 0.0
      %1467 = vmatprep.subr.mxu0 0.0
      %1468 = vmatpush2.msra.mxu0 0.0
      %1469 = vmatprep.subr.mxu0 0.0
      %1470 = vmatpush2.msra.mxu0 0.0
      %1471 = vmatprep.subr.mxu0 0.0
      %1472 = vmatpush2.msra.mxu0 0.0
      %1473 = vmatprep.subr.mxu0 0.0
      %1474 = vmatpush2.msra.mxu0 0.0
      %1475 = vmatprep.subr.mxu0 0.0
      %1476 = vmatpush2.msra.mxu0 0.0
      %1477 = vmatprep.subr.mxu0 0.0
      %1478 = vmatpush2.msra.mxu0 0.0
      %1479 = vmatprep.subr.mxu0 0.0
      %1480 = vmatpush2.msra.mxu0 0.0
      %1481 = vmatprep.subr.mxu0 0.0
      %1482 = vmatpush2.msra.mxu0 0.0
      %1483 = vmatprep.subr.mxu0 0.0
      %1484 = vmatpush2.msra.mxu0 0.0
      %1485 = vmatprep.subr.mxu0 0.0
      %1486 = vmatpush2.msra.mxu0 0.0
      %1487 = vmatprep.subr.mxu0 0.0
      %1488 = vmatpush2.msra.mxu0 0.0
      %1489 = vmatprep.subr.mxu0 0.0
      %1490 = vmatpush2.msra.mxu0 0.0
      %1491 = vmatprep.mubr.f32.mxu0 0.0
      %1492 = vmatmul.mubr.f32.gmra.mxu0 %v1212
      %v1493 = vpop.f32.mrf.mxu0
      %v1494 = vadd.f32 %v1208, %v1493
      %v1495 = vpop.f32.mrf.mxu0
      %v1496 = vadd.f32 %v1208, %v1495
      %1497 = vdwg.mxu0
      %v1498 = vmax.f32 %v636, 0.0
      %v1499 = vmax.f32 %v638, 0.0
      %v1500 = vmax.f32 %v707, 0.0
      %v1501 = vmax.f32 %v709, 0.0
      %v1502 = vmax.f32 %v778, 0.0
      %v1503 = vmax.f32 %v780, 0.0
      %v1504 = vmax.f32 %v849, 0.0
      %v1505 = vmax.f32 %v851, 0.0
      %v1506 = vmax.f32 %v1281, 0.0
      %v1507 = vmax.f32 %v1283, 0.0
      %v1508 = vmax.f32 %v1352, 0.0
      %v1509 = vmax.f32 %v1354, 0.0
      %v1510 = vmax.f32 %v1423, 0.0
      %v1511 = vmax.f32 %v1425, 0.0
      %v1512 = vmax.f32 %v1494, 0.0
      %v1513 = vmax.f32 %v1496, 0.0
      %v1514 = vld [vmem:[%s7] sm:$0xff]
      %v1515 = vld [vmem:[%s11] sm:$0xff]
      %1517 = vset.pattern.permute.xlu0 0
      %1518 = vperm.xlu0 %1517, %v1515
      %v1519 = vpop.permute.xlu0 %1518
      %vm1521 = vcmask 130048
      %v1523 = vsel %vm1521, %v1514, 0
      %1525 = vmatprep.subr.mxu0 0.0
      %1526 = vmatpush1.msra.mxu0 0.0
      %1527 = vmatprep.subr.mxu0 0.0
      %1528 = vmatpush1.msra.mxu0 0.0
      %1529 = vmatprep.subr.mxu0 0.0
      %1530 = vmatpush1.msra.mxu0 0.0
      %1531 = vmatprep.subr.mxu0 0.0
      %1532 = vmatpush1.msra.mxu0 0.0
      %1533 = vmatprep.subr.mxu0 0.0
      %1534 = vmatpush1.msra.mxu0 0.0
      %1535 = vmatprep.subr.mxu0 0.0
      %1536 = vmatpush1.msra.mxu0 0.0
      %1537 = vmatprep.subr.mxu0 0.0
      %1538 = vmatpush1.msra.mxu0 0.0
      %1539 = vmatprep.subr.mxu0 0.0
      %1540 = vmatpush1.msra.mxu0 0.0
      %1541 = vmatprep.subr.mxu0 0.0
      %1542 = vmatpush1.msra.mxu0 0.0
      %1543 = vmatprep.subr.mxu0 0.0
      %1544 = vmatpush1.msra.mxu0 0.0
      %1545 = vmatprep.subr.mxu0 0.0
      %1546 = vmatpush1.msra.mxu0 0.0
      %1547 = vmatprep.subr.mxu0 0.0
      %1548 = vmatpush1.msra.mxu0 0.0
      %1549 = vmatprep.subr.mxu0 0.0
      %1550 = vmatpush1.msra.mxu0 0.0
      %1551 = vmatprep.subr.mxu0 0.0
      %1552 = vmatpush1.msra.mxu0 0.0
      %1553 = vmatprep.subr.mxu0 %v1507
      %1554 = vmatpush1.msra.mxu0 %v1506
      %1555 = vmatprep.subr.mxu0 %v1499
      %1556 = vmatpush1.msra.mxu0 %v1498
      %1557 = vmatprep.subr.mxu0 0.0
      %1558 = vmatpush2.msra.mxu0 0.0
      %1559 = vmatprep.subr.mxu0 0.0
      %1560 = vmatpush2.msra.mxu0 0.0
      %1561 = vmatprep.subr.mxu0 0.0
      %1562 = vmatpush2.msra.mxu0 0.0
      %1563 = vmatprep.subr.mxu0 0.0
      %1564 = vmatpush2.msra.mxu0 0.0
      %1565 = vmatprep.subr.mxu0 0.0
      %1566 = vmatpush2.msra.mxu0 0.0
      %1567 = vmatprep.subr.mxu0 0.0
      %1568 = vmatpush2.msra.mxu0 0.0
      %1569 = vmatprep.subr.mxu0 0.0
      %1570 = vmatpush2.msra.mxu0 0.0
      %1571 = vmatprep.subr.mxu0 0.0
      %1572 = vmatpush2.msra.mxu0 0.0
      %1573 = vmatprep.subr.mxu0 0.0
      %1574 = vmatpush2.msra.mxu0 0.0
      %1575 = vmatprep.subr.mxu0 0.0
      %1576 = vmatpush2.msra.mxu0 0.0
      %1577 = vmatprep.subr.mxu0 0.0
      %1578 = vmatpush2.msra.mxu0 0.0
      %1579 = vmatprep.subr.mxu0 0.0
      %1580 = vmatpush2.msra.mxu0 0.0
      %1581 = vmatprep.subr.mxu0 0.0
      %1582 = vmatpush2.msra.mxu0 0.0
      %1583 = vmatprep.subr.mxu0 0.0
      %1584 = vmatpush2.msra.mxu0 0.0
      %1585 = vmatprep.subr.mxu0 0.0
      %1586 = vmatpush2.msra.mxu0 0.0
      %1587 = vmatprep.subr.mxu0 0.0
      %1588 = vmatpush2.msra.mxu0 0.0
      %1589 = vmatprep.mubr.f32.mxu0 0.0
      %1590 = vmatmul.mubr.f32.gmra.mxu0 %v1523
      %v1591 = vpop.f32.mrf.mxu0
      %v1592 = vadd.f32 %v1519, %v1591
      %v1593 = vpop.f32.mrf.mxu0
      %v1594 = vadd.f32 %v1519, %v1593
      %1595 = vdwg.mxu0
      %1596 = vmatprep.subr.mxu0 0.0
      %1597 = vmatpush1.msra.mxu0 0.0
      %1598 = vmatprep.subr.mxu0 0.0
      %1599 = vmatpush1.msra.mxu0 0.0
      %1600 = vmatprep.subr.mxu0 0.0
      %1601 = vmatpush1.msra.mxu0 0.0
      %1602 = vmatprep.subr.mxu0 0.0
      %1603 = vmatpush1.msra.mxu0 0.0
      %1604 = vmatprep.subr.mxu0 0.0
      %1605 = vmatpush1.msra.mxu0 0.0
      %1606 = vmatprep.subr.mxu0 0.0
      %1607 = vmatpush1.msra.mxu0 0.0
      %1608 = vmatprep.subr.mxu0 0.0
      %1609 = vmatpush1.msra.mxu0 0.0
      %1610 = vmatprep.subr.mxu0 0.0
      %1611 = vmatpush1.msra.mxu0 0.0
      %1612 = vmatprep.subr.mxu0 0.0
      %1613 = vmatpush1.msra.mxu0 0.0
      %1614 = vmatprep.subr.mxu0 0.0
      %1615 = vmatpush1.msra.mxu0 0.0
      %1616 = vmatprep.subr.mxu0 0.0
      %1617 = vmatpush1.msra.mxu0 0.0
      %1618 = vmatprep.subr.mxu0 0.0
      %1619 = vmatpush1.msra.mxu0 0.0
      %1620 = vmatprep.subr.mxu0 0.0
      %1621 = vmatpush1.msra.mxu0 0.0
      %1622 = vmatprep.subr.mxu0 0.0
      %1623 = vmatpush1.msra.mxu0 0.0
      %1624 = vmatprep.subr.mxu0 %v1509
      %1625 = vmatpush1.msra.mxu0 %v1508
      %1626 = vmatprep.subr.mxu0 %v1501
      %1627 = vmatpush1.msra.mxu0 %v1500
      %1628 = vmatprep.subr.mxu0 0.0
      %1629 = vmatpush2.msra.mxu0 0.0
      %1630 = vmatprep.subr.mxu0 0.0
      %1631 = vmatpush2.msra.mxu0 0.0
      %1632 = vmatprep.subr.mxu0 0.0
      %1633 = vmatpush2.msra.mxu0 0.0
      %1634 = vmatprep.subr.mxu0 0.0
      %1635 = vmatpush2.msra.mxu0 0.0
      %1636 = vmatprep.subr.mxu0 0.0
      %1637 = vmatpush2.msra.mxu0 0.0
      %1638 = vmatprep.subr.mxu0 0.0
      %1639 = vmatpush2.msra.mxu0 0.0
      %1640 = vmatprep.subr.mxu0 0.0
      %1641 = vmatpush2.msra.mxu0 0.0
      %1642 = vmatprep.subr.mxu0 0.0
      %1643 = vmatpush2.msra.mxu0 0.0
      %1644 = vmatprep.subr.mxu0 0.0
      %1645 = vmatpush2.msra.mxu0 0.0
      %1646 = vmatprep.subr.mxu0 0.0
      %1647 = vmatpush2.msra.mxu0 0.0
      %1648 = vmatprep.subr.mxu0 0.0
      %1649 = vmatpush2.msra.mxu0 0.0
      %1650 = vmatprep.subr.mxu0 0.0
      %1651 = vmatpush2.msra.mxu0 0.0
      %1652 = vmatprep.subr.mxu0 0.0
      %1653 = vmatpush2.msra.mxu0 0.0
      %1654 = vmatprep.subr.mxu0 0.0
      %1655 = vmatpush2.msra.mxu0 0.0
      %1656 = vmatprep.subr.mxu0 0.0
      %1657 = vmatpush2.msra.mxu0 0.0
      %1658 = vmatprep.subr.mxu0 0.0
      %1659 = vmatpush2.msra.mxu0 0.0
      %1660 = vmatprep.mubr.f32.mxu0 0.0
      %1661 = vmatmul.mubr.f32.gmra.mxu0 %v1523
      %v1662 = vpop.f32.mrf.mxu0
      %v1663 = vadd.f32 %v1519, %v1662
      %v1664 = vpop.f32.mrf.mxu0
      %v1665 = vadd.f32 %v1519, %v1664
      %1666 = vdwg.mxu0
      %1667 = vmatprep.subr.mxu0 0.0
      %1668 = vmatpush1.msra.mxu0 0.0
      %1669 = vmatprep.subr.mxu0 0.0
      %1670 = vmatpush1.msra.mxu0 0.0
      %1671 = vmatprep.subr.mxu0 0.0
      %1672 = vmatpush1.msra.mxu0 0.0
      %1673 = vmatprep.subr.mxu0 0.0
      %1674 = vmatpush1.msra.mxu0 0.0
      %1675 = vmatprep.subr.mxu0 0.0
      %1676 = vmatpush1.msra.mxu0 0.0
      %1677 = vmatprep.subr.mxu0 0.0
      %1678 = vmatpush1.msra.mxu0 0.0
      %1679 = vmatprep.subr.mxu0 0.0
      %1680 = vmatpush1.msra.mxu0 0.0
      %1681 = vmatprep.subr.mxu0 0.0
      %1682 = vmatpush1.msra.mxu0 0.0
      %1683 = vmatprep.subr.mxu0 0.0
      %1684 = vmatpush1.msra.mxu0 0.0
      %1685 = vmatprep.subr.mxu0 0.0
      %1686 = vmatpush1.msra.mxu0 0.0
      %1687 = vmatprep.subr.mxu0 0.0
      %1688 = vmatpush1.msra.mxu0 0.0
      %1689 = vmatprep.subr.mxu0 0.0
      %1690 = vmatpush1.msra.mxu0 0.0
      %1691 = vmatprep.subr.mxu0 0.0
      %1692 = vmatpush1.msra.mxu0 0.0
      %1693 = vmatprep.subr.mxu0 0.0
      %1694 = vmatpush1.msra.mxu0 0.0
      %1695 = vmatprep.subr.mxu0 %v1511
      %1696 = vmatpush1.msra.mxu0 %v1510
      %1697 = vmatprep.subr.mxu0 %v1503
      %1698 = vmatpush1.msra.mxu0 %v1502
      %1699 = vmatprep.subr.mxu0 0.0
      %1700 = vmatpush2.msra.mxu0 0.0
      %1701 = vmatprep.subr.mxu0 0.0
      %1702 = vmatpush2.msra.mxu0 0.0
      %1703 = vmatprep.subr.mxu0 0.0
      %1704 = vmatpush2.msra.mxu0 0.0
      %1705 = vmatprep.subr.mxu0 0.0
      %1706 = vmatpush2.msra.mxu0 0.0
      %1707 = vmatprep.subr.mxu0 0.0
      %1708 = vmatpush2.msra.mxu0 0.0
      %1709 = vmatprep.subr.mxu0 0.0
      %1710 = vmatpush2.msra.mxu0 0.0
      %1711 = vmatprep.subr.mxu0 0.0
      %1712 = vmatpush2.msra.mxu0 0.0
      %1713 = vmatprep.subr.mxu0 0.0
      %1714 = vmatpush2.msra.mxu0 0.0
      %1715 = vmatprep.subr.mxu0 0.0
      %1716 = vmatpush2.msra.mxu0 0.0
      %1717 = vmatprep.subr.mxu0 0.0
      %1718 = vmatpush2.msra.mxu0 0.0
      %1719 = vmatprep.subr.mxu0 0.0
      %1720 = vmatpush2.msra.mxu0 0.0
      %1721 = vmatprep.subr.mxu0 0.0
      %1722 = vmatpush2.msra.mxu0 0.0
      %1723 = vmatprep.subr.mxu0 0.0
      %1724 = vmatpush2.msra.mxu0 0.0
      %1725 = vmatprep.subr.mxu0 0.0
      %1726 = vmatpush2.msra.mxu0 0.0
      %1727 = vmatprep.subr.mxu0 0.0
      %1728 = vmatpush2.msra.mxu0 0.0
      %1729 = vmatprep.subr.mxu0 0.0
      %1730 = vmatpush2.msra.mxu0 0.0
      %1731 = vmatprep.mubr.f32.mxu0 0.0
      %1732 = vmatmul.mubr.f32.gmra.mxu0 %v1523
      %v1733 = vpop.f32.mrf.mxu0
      %v1734 = vadd.f32 %v1519, %v1733
      %v1735 = vpop.f32.mrf.mxu0
      %v1736 = vadd.f32 %v1519, %v1735
      %1737 = vdwg.mxu0
      %1738 = vmatprep.subr.mxu0 0.0
      %1739 = vmatpush1.msra.mxu0 0.0
      %1740 = vmatprep.subr.mxu0 0.0
      %1741 = vmatpush1.msra.mxu0 0.0
      %1742 = vmatprep.subr.mxu0 0.0
      %1743 = vmatpush1.msra.mxu0 0.0
      %1744 = vmatprep.subr.mxu0 0.0
      %1745 = vmatpush1.msra.mxu0 0.0
      %1746 = vmatprep.subr.mxu0 0.0
      %1747 = vmatpush1.msra.mxu0 0.0
      %1748 = vmatprep.subr.mxu0 0.0
      %1749 = vmatpush1.msra.mxu0 0.0
      %1750 = vmatprep.subr.mxu0 0.0
      %1751 = vmatpush1.msra.mxu0 0.0
      %1752 = vmatprep.subr.mxu0 0.0
      %1753 = vmatpush1.msra.mxu0 0.0
      %1754 = vmatprep.subr.mxu0 0.0
      %1755 = vmatpush1.msra.mxu0 0.0
      %1756 = vmatprep.subr.mxu0 0.0
      %1757 = vmatpush1.msra.mxu0 0.0
      %1758 = vmatprep.subr.mxu0 0.0
      %1759 = vmatpush1.msra.mxu0 0.0
      %1760 = vmatprep.subr.mxu0 0.0
      %1761 = vmatpush1.msra.mxu0 0.0
      %1762 = vmatprep.subr.mxu0 0.0
      %1763 = vmatpush1.msra.mxu0 0.0
      %1764 = vmatprep.subr.mxu0 0.0
      %1765 = vmatpush1.msra.mxu0 0.0
      %1766 = vmatprep.subr.mxu0 %v1513
      %1767 = vmatpush1.msra.mxu0 %v1512
      %1768 = vmatprep.subr.mxu0 %v1505
      %1769 = vmatpush1.msra.mxu0 %v1504
      %1770 = vmatprep.subr.mxu0 0.0
      %1771 = vmatpush2.msra.mxu0 0.0
      %1772 = vmatprep.subr.mxu0 0.0
      %1773 = vmatpush2.msra.mxu0 0.0
      %1774 = vmatprep.subr.mxu0 0.0
      %1775 = vmatpush2.msra.mxu0 0.0
      %1776 = vmatprep.subr.mxu0 0.0
      %1777 = vmatpush2.msra.mxu0 0.0
      %1778 = vmatprep.subr.mxu0 0.0
      %1779 = vmatpush2.msra.mxu0 0.0
      %1780 = vmatprep.subr.mxu0 0.0
      %1781 = vmatpush2.msra.mxu0 0.0
      %1782 = vmatprep.subr.mxu0 0.0
      %1783 = vmatpush2.msra.mxu0 0.0
      %1784 = vmatprep.subr.mxu0 0.0
      %1785 = vmatpush2.msra.mxu0 0.0
      %1786 = vmatprep.subr.mxu0 0.0
      %1787 = vmatpush2.msra.mxu0 0.0
      %1788 = vmatprep.subr.mxu0 0.0
      %1789 = vmatpush2.msra.mxu0 0.0
      %1790 = vmatprep.subr.mxu0 0.0
      %1791 = vmatpush2.msra.mxu0 0.0
      %1792 = vmatprep.subr.mxu0 0.0
      %1793 = vmatpush2.msra.mxu0 0.0
      %1794 = vmatprep.subr.mxu0 0.0
      %1795 = vmatpush2.msra.mxu0 0.0
      %1796 = vmatprep.subr.mxu0 0.0
      %1797 = vmatpush2.msra.mxu0 0.0
      %1798 = vmatprep.subr.mxu0 0.0
      %1799 = vmatpush2.msra.mxu0 0.0
      %1800 = vmatprep.subr.mxu0 0.0
      %1801 = vmatpush2.msra.mxu0 0.0
      %1802 = vmatprep.mubr.f32.mxu0 0.0
      %1803 = vmatmul.mubr.f32.gmra.mxu0 %v1523
      %v1804 = vpop.f32.mrf.mxu0
      %v1805 = vadd.f32 %v1519, %v1804
      %v1806 = vpop.f32.mrf.mxu0
      %v1807 = vadd.f32 %v1519, %v1806
      %1808 = vdwg.mxu0
      %v1809 = vadd.f32 %v1592, %v972
      %v1810 = vadd.f32 %v1594, %v974
      %v1811 = vadd.f32 %v1663, %v1043
      %v1812 = vadd.f32 %v1665, %v1045
      %v1813 = vadd.f32 %v1734, %v1114
      %v1814 = vadd.f32 %v1736, %v1116
      %v1815 = vadd.f32 %v1805, %v1185
      %v1816 = vadd.f32 %v1807, %v1187
      %v1817 = vmax.f32 %v972, 0.0
      %v1818 = vmax.f32 %v974, 0.0
      %v1819 = vmax.f32 %v1043, 0.0
      %v1820 = vmax.f32 %v1045, 0.0
      %v1821 = vmax.f32 %v1114, 0.0
      %v1822 = vmax.f32 %v1116, 0.0
      %v1823 = vmax.f32 %v1185, 0.0
      %v1824 = vmax.f32 %v1187, 0.0
      %v1825 = vmax.f32 %v1809, 0.0
      %v1826 = vmax.f32 %v1810, 0.0
      %v1827 = vmax.f32 %v1811, 0.0
      %v1828 = vmax.f32 %v1812, 0.0
      %v1829 = vmax.f32 %v1813, 0.0
      %v1830 = vmax.f32 %v1814, 0.0
      %v1831 = vmax.f32 %v1815, 0.0
      %v1832 = vmax.f32 %v1816, 0.0
      %v1833 = vld [vmem:[%s8] sm:$0xff]
      %1834 = vset.pattern.permute.xlu0 1
      %1835 = vperm.xlu0 %1834, %v1515
      %v1836 = vpop.permute.xlu0 %1835
      %v1839 = vsel %vm1521, %v1833, 0
      %1841 = vmatprep.subr.mxu0 0.0
      %1842 = vmatpush1.msra.mxu0 0.0
      %1843 = vmatprep.subr.mxu0 0.0
      %1844 = vmatpush1.msra.mxu0 0.0
      %1845 = vmatprep.subr.mxu0 0.0
      %1846 = vmatpush1.msra.mxu0 0.0
      %1847 = vmatprep.subr.mxu0 0.0
      %1848 = vmatpush1.msra.mxu0 0.0
      %1849 = vmatprep.subr.mxu0 0.0
      %1850 = vmatpush1.msra.mxu0 0.0
      %1851 = vmatprep.subr.mxu0 0.0
      %1852 = vmatpush1.msra.mxu0 0.0
      %1853 = vmatprep.subr.mxu0 0.0
      %1854 = vmatpush1.msra.mxu0 0.0
      %1855 = vmatprep.subr.mxu0 0.0
      %1856 = vmatpush1.msra.mxu0 0.0
      %1857 = vmatprep.subr.mxu0 0.0
      %1858 = vmatpush1.msra.mxu0 0.0
      %1859 = vmatprep.subr.mxu0 0.0
      %1860 = vmatpush1.msra.mxu0 0.0
      %1861 = vmatprep.subr.mxu0 0.0
      %1862 = vmatpush1.msra.mxu0 0.0
      %1863 = vmatprep.subr.mxu0 0.0
      %1864 = vmatpush1.msra.mxu0 0.0
      %1865 = vmatprep.subr.mxu0 0.0
      %1866 = vmatpush1.msra.mxu0 0.0
      %1867 = vmatprep.subr.mxu0 0.0
      %1868 = vmatpush1.msra.mxu0 0.0
      %1869 = vmatprep.subr.mxu0 %v1826
      %1870 = vmatpush1.msra.mxu0 %v1825
      %1871 = vmatprep.subr.mxu0 %v1818
      %1872 = vmatpush1.msra.mxu0 %v1817
      %1873 = vmatprep.subr.mxu0 0.0
      %1874 = vmatpush2.msra.mxu0 0.0
      %1875 = vmatprep.subr.mxu0 0.0
      %1876 = vmatpush2.msra.mxu0 0.0
      %1877 = vmatprep.subr.mxu0 0.0
      %1878 = vmatpush2.msra.mxu0 0.0
      %1879 = vmatprep.subr.mxu0 0.0
      %1880 = vmatpush2.msra.mxu0 0.0
      %1881 = vmatprep.subr.mxu0 0.0
      %1882 = vmatpush2.msra.mxu0 0.0
      %1883 = vmatprep.subr.mxu0 0.0
      %1884 = vmatpush2.msra.mxu0 0.0
      %1885 = vmatprep.subr.mxu0 0.0
      %1886 = vmatpush2.msra.mxu0 0.0
      %1887 = vmatprep.subr.mxu0 0.0
      %1888 = vmatpush2.msra.mxu0 0.0
      %1889 = vmatprep.subr.mxu0 0.0
      %1890 = vmatpush2.msra.mxu0 0.0
      %1891 = vmatprep.subr.mxu0 0.0
      %1892 = vmatpush2.msra.mxu0 0.0
      %1893 = vmatprep.subr.mxu0 0.0
      %1894 = vmatpush2.msra.mxu0 0.0
      %1895 = vmatprep.subr.mxu0 0.0
      %1896 = vmatpush2.msra.mxu0 0.0
      %1897 = vmatprep.subr.mxu0 0.0
      %1898 = vmatpush2.msra.mxu0 0.0
      %1899 = vmatprep.subr.mxu0 0.0
      %1900 = vmatpush2.msra.mxu0 0.0
      %1901 = vmatprep.subr.mxu0 0.0
      %1902 = vmatpush2.msra.mxu0 0.0
      %1903 = vmatprep.subr.mxu0 0.0
      %1904 = vmatpush2.msra.mxu0 0.0
      %1905 = vmatprep.mubr.f32.mxu0 0.0
      %1906 = vmatmul.mubr.f32.gmra.mxu0 %v1839
      %v1907 = vpop.f32.mrf.mxu0
      %v1908 = vadd.f32 %v1836, %v1907
      %v1909 = vpop.f32.mrf.mxu0
      %v1910 = vadd.f32 %v1836, %v1909
      %1911 = vdwg.mxu0
      %1912 = vmatprep.subr.mxu0 0.0
      %1913 = vmatpush1.msra.mxu0 0.0
      %1914 = vmatprep.subr.mxu0 0.0
      %1915 = vmatpush1.msra.mxu0 0.0
      %1916 = vmatprep.subr.mxu0 0.0
      %1917 = vmatpush1.msra.mxu0 0.0
      %1918 = vmatprep.subr.mxu0 0.0
      %1919 = vmatpush1.msra.mxu0 0.0
      %1920 = vmatprep.subr.mxu0 0.0
      %1921 = vmatpush1.msra.mxu0 0.0
      %1922 = vmatprep.subr.mxu0 0.0
      %1923 = vmatpush1.msra.mxu0 0.0
      %1924 = vmatprep.subr.mxu0 0.0
      %1925 = vmatpush1.msra.mxu0 0.0
      %1926 = vmatprep.subr.mxu0 0.0
      %1927 = vmatpush1.msra.mxu0 0.0
      %1928 = vmatprep.subr.mxu0 0.0
      %1929 = vmatpush1.msra.mxu0 0.0
      %1930 = vmatprep.subr.mxu0 0.0
      %1931 = vmatpush1.msra.mxu0 0.0
      %1932 = vmatprep.subr.mxu0 0.0
      %1933 = vmatpush1.msra.mxu0 0.0
      %1934 = vmatprep.subr.mxu0 0.0
      %1935 = vmatpush1.msra.mxu0 0.0
      %1936 = vmatprep.subr.mxu0 0.0
      %1937 = vmatpush1.msra.mxu0 0.0
      %1938 = vmatprep.subr.mxu0 0.0
      %1939 = vmatpush1.msra.mxu0 0.0
      %1940 = vmatprep.subr.mxu0 %v1828
      %1941 = vmatpush1.msra.mxu0 %v1827
      %1942 = vmatprep.subr.mxu0 %v1820
      %1943 = vmatpush1.msra.mxu0 %v1819
      %1944 = vmatprep.subr.mxu0 0.0
      %1945 = vmatpush2.msra.mxu0 0.0
      %1946 = vmatprep.subr.mxu0 0.0
      %1947 = vmatpush2.msra.mxu0 0.0
      %1948 = vmatprep.subr.mxu0 0.0
      %1949 = vmatpush2.msra.mxu0 0.0
      %1950 = vmatprep.subr.mxu0 0.0
      %1951 = vmatpush2.msra.mxu0 0.0
      %1952 = vmatprep.subr.mxu0 0.0
      %1953 = vmatpush2.msra.mxu0 0.0
      %1954 = vmatprep.subr.mxu0 0.0
      %1955 = vmatpush2.msra.mxu0 0.0
      %1956 = vmatprep.subr.mxu0 0.0
      %1957 = vmatpush2.msra.mxu0 0.0
      %1958 = vmatprep.subr.mxu0 0.0
      %1959 = vmatpush2.msra.mxu0 0.0
      %1960 = vmatprep.subr.mxu0 0.0
      %1961 = vmatpush2.msra.mxu0 0.0
      %1962 = vmatprep.subr.mxu0 0.0
      %1963 = vmatpush2.msra.mxu0 0.0
      %1964 = vmatprep.subr.mxu0 0.0
      %1965 = vmatpush2.msra.mxu0 0.0
      %1966 = vmatprep.subr.mxu0 0.0
      %1967 = vmatpush2.msra.mxu0 0.0
      %1968 = vmatprep.subr.mxu0 0.0
      %1969 = vmatpush2.msra.mxu0 0.0
      %1970 = vmatprep.subr.mxu0 0.0
      %1971 = vmatpush2.msra.mxu0 0.0
      %1972 = vmatprep.subr.mxu0 0.0
      %1973 = vmatpush2.msra.mxu0 0.0
      %1974 = vmatprep.subr.mxu0 0.0
      %1975 = vmatpush2.msra.mxu0 0.0
      %1976 = vmatprep.mubr.f32.mxu0 0.0
      %1977 = vmatmul.mubr.f32.gmra.mxu0 %v1839
      %v1978 = vpop.f32.mrf.mxu0
      %v1979 = vadd.f32 %v1836, %v1978
      %v1980 = vpop.f32.mrf.mxu0
      %v1981 = vadd.f32 %v1836, %v1980
      %1982 = vdwg.mxu0
      %1983 = vmatprep.subr.mxu0 0.0
      %1984 = vmatpush1.msra.mxu0 0.0
      %1985 = vmatprep.subr.mxu0 0.0
      %1986 = vmatpush1.msra.mxu0 0.0
      %1987 = vmatprep.subr.mxu0 0.0
      %1988 = vmatpush1.msra.mxu0 0.0
      %1989 = vmatprep.subr.mxu0 0.0
      %1990 = vmatpush1.msra.mxu0 0.0
      %1991 = vmatprep.subr.mxu0 0.0
      %1992 = vmatpush1.msra.mxu0 0.0
      %1993 = vmatprep.subr.mxu0 0.0
      %1994 = vmatpush1.msra.mxu0 0.0
      %1995 = vmatprep.subr.mxu0 0.0
      %1996 = vmatpush1.msra.mxu0 0.0
      %1997 = vmatprep.subr.mxu0 0.0
      %1998 = vmatpush1.msra.mxu0 0.0
      %1999 = vmatprep.subr.mxu0 0.0
      %2000 = vmatpush1.msra.mxu0 0.0
      %2001 = vmatprep.subr.mxu0 0.0
      %2002 = vmatpush1.msra.mxu0 0.0
      %2003 = vmatprep.subr.mxu0 0.0
      %2004 = vmatpush1.msra.mxu0 0.0
      %2005 = vmatprep.subr.mxu0 0.0
      %2006 = vmatpush1.msra.mxu0 0.0
      %2007 = vmatprep.subr.mxu0 0.0
      %2008 = vmatpush1.msra.mxu0 0.0
      %2009 = vmatprep.subr.mxu0 0.0
      %2010 = vmatpush1.msra.mxu0 0.0
      %2011 = vmatprep.subr.mxu0 %v1830
      %2012 = vmatpush1.msra.mxu0 %v1829
      %2013 = vmatprep.subr.mxu0 %v1822
      %2014 = vmatpush1.msra.mxu0 %v1821
      %2015 = vmatprep.subr.mxu0 0.0
      %2016 = vmatpush2.msra.mxu0 0.0
      %2017 = vmatprep.subr.mxu0 0.0
      %2018 = vmatpush2.msra.mxu0 0.0
      %2019 = vmatprep.subr.mxu0 0.0
      %2020 = vmatpush2.msra.mxu0 0.0
      %2021 = vmatprep.subr.mxu0 0.0
      %2022 = vmatpush2.msra.mxu0 0.0
      %2023 = vmatprep.subr.mxu0 0.0
      %2024 = vmatpush2.msra.mxu0 0.0
      %2025 = vmatprep.subr.mxu0 0.0
      %2026 = vmatpush2.msra.mxu0 0.0
      %2027 = vmatprep.subr.mxu0 0.0
      %2028 = vmatpush2.msra.mxu0 0.0
      %2029 = vmatprep.subr.mxu0 0.0
      %2030 = vmatpush2.msra.mxu0 0.0
      %2031 = vmatprep.subr.mxu0 0.0
      %2032 = vmatpush2.msra.mxu0 0.0
      %2033 = vmatprep.subr.mxu0 0.0
      %2034 = vmatpush2.msra.mxu0 0.0
      %2035 = vmatprep.subr.mxu0 0.0
      %2036 = vmatpush2.msra.mxu0 0.0
      %2037 = vmatprep.subr.mxu0 0.0
      %2038 = vmatpush2.msra.mxu0 0.0
      %2039 = vmatprep.subr.mxu0 0.0
      %2040 = vmatpush2.msra.mxu0 0.0
      %2041 = vmatprep.subr.mxu0 0.0
      %2042 = vmatpush2.msra.mxu0 0.0
      %2043 = vmatprep.subr.mxu0 0.0
      %2044 = vmatpush2.msra.mxu0 0.0
      %2045 = vmatprep.subr.mxu0 0.0
      %2046 = vmatpush2.msra.mxu0 0.0
      %2047 = vmatprep.mubr.f32.mxu0 0.0
      %2048 = vmatmul.mubr.f32.gmra.mxu0 %v1839
      %v2049 = vpop.f32.mrf.mxu0
      %v2050 = vadd.f32 %v1836, %v2049
      %v2051 = vpop.f32.mrf.mxu0
      %v2052 = vadd.f32 %v1836, %v2051
      %2053 = vdwg.mxu0
      %2054 = vmatprep.subr.mxu0 0.0
      %2055 = vmatpush1.msra.mxu0 0.0
      %2056 = vmatprep.subr.mxu0 0.0
      %2057 = vmatpush1.msra.mxu0 0.0
      %2058 = vmatprep.subr.mxu0 0.0
      %2059 = vmatpush1.msra.mxu0 0.0
      %2060 = vmatprep.subr.mxu0 0.0
      %2061 = vmatpush1.msra.mxu0 0.0
      %2062 = vmatprep.subr.mxu0 0.0
      %2063 = vmatpush1.msra.mxu0 0.0
      %2064 = vmatprep.subr.mxu0 0.0
      %2065 = vmatpush1.msra.mxu0 0.0
      %2066 = vmatprep.subr.mxu0 0.0
      %2067 = vmatpush1.msra.mxu0 0.0
      %2068 = vmatprep.subr.mxu0 0.0
      %2069 = vmatpush1.msra.mxu0 0.0
      %2070 = vmatprep.subr.mxu0 0.0
      %2071 = vmatpush1.msra.mxu0 0.0
      %2072 = vmatprep.subr.mxu0 0.0
      %2073 = vmatpush1.msra.mxu0 0.0
      %2074 = vmatprep.subr.mxu0 0.0
      %2075 = vmatpush1.msra.mxu0 0.0
      %2076 = vmatprep.subr.mxu0 0.0
      %2077 = vmatpush1.msra.mxu0 0.0
      %2078 = vmatprep.subr.mxu0 0.0
      %2079 = vmatpush1.msra.mxu0 0.0
      %2080 = vmatprep.subr.mxu0 0.0
      %2081 = vmatpush1.msra.mxu0 0.0
      %2082 = vmatprep.subr.mxu0 %v1832
      %2083 = vmatpush1.msra.mxu0 %v1831
      %2084 = vmatprep.subr.mxu0 %v1824
      %2085 = vmatpush1.msra.mxu0 %v1823
      %2086 = vmatprep.subr.mxu0 0.0
      %2087 = vmatpush2.msra.mxu0 0.0
      %2088 = vmatprep.subr.mxu0 0.0
      %2089 = vmatpush2.msra.mxu0 0.0
      %2090 = vmatprep.subr.mxu0 0.0
      %2091 = vmatpush2.msra.mxu0 0.0
      %2092 = vmatprep.subr.mxu0 0.0
      %2093 = vmatpush2.msra.mxu0 0.0
      %2094 = vmatprep.subr.mxu0 0.0
      %2095 = vmatpush2.msra.mxu0 0.0
      %2096 = vmatprep.subr.mxu0 0.0
      %2097 = vmatpush2.msra.mxu0 0.0
      %2098 = vmatprep.subr.mxu0 0.0
      %2099 = vmatpush2.msra.mxu0 0.0
      %2100 = vmatprep.subr.mxu0 0.0
      %2101 = vmatpush2.msra.mxu0 0.0
      %2102 = vmatprep.subr.mxu0 0.0
      %2103 = vmatpush2.msra.mxu0 0.0
      %2104 = vmatprep.subr.mxu0 0.0
      %2105 = vmatpush2.msra.mxu0 0.0
      %2106 = vmatprep.subr.mxu0 0.0
      %2107 = vmatpush2.msra.mxu0 0.0
      %2108 = vmatprep.subr.mxu0 0.0
      %2109 = vmatpush2.msra.mxu0 0.0
      %2110 = vmatprep.subr.mxu0 0.0
      %2111 = vmatpush2.msra.mxu0 0.0
      %2112 = vmatprep.subr.mxu0 0.0
      %2113 = vmatpush2.msra.mxu0 0.0
      %2114 = vmatprep.subr.mxu0 0.0
      %2115 = vmatpush2.msra.mxu0 0.0
      %2116 = vmatprep.subr.mxu0 0.0
      %2117 = vmatpush2.msra.mxu0 0.0
      %2118 = vmatprep.mubr.f32.mxu0 0.0
      %2119 = vmatmul.mubr.f32.gmra.mxu0 %v1839
      %v2120 = vpop.f32.mrf.mxu0
      %v2121 = vadd.f32 %v1836, %v2120
      %v2122 = vpop.f32.mrf.mxu0
      %v2123 = vadd.f32 %v1836, %v2122
      %2124 = vdwg.mxu0
      %v2125 = vadd.f32 %v1908, %v636
      %v2126 = vadd.f32 %v1910, %v638
      %v2127 = vadd.f32 %v1979, %v707
      %v2128 = vadd.f32 %v1981, %v709
      %v2129 = vadd.f32 %v2050, %v778
      %v2130 = vadd.f32 %v2052, %v780
      %v2131 = vadd.f32 %v2121, %v849
      %v2132 = vadd.f32 %v2123, %v851
      %v2133 = vadd.f32 %v2125, %v1281
      %v2134 = vadd.f32 %v2126, %v1283
      %v2135 = vadd.f32 %v2127, %v1352
      %v2136 = vadd.f32 %v2128, %v1354
      %v2137 = vadd.f32 %v2129, %v1423
      %v2138 = vadd.f32 %v2130, %v1425
      %v2139 = vadd.f32 %v2131, %v1494
      %v2140 = vadd.f32 %v2132, %v1496
      %v2141 = vld [vmem:[%s9] sm:$0xff]
      %2142 = vset.pattern.permute.xlu0 2
      %2143 = vperm.xlu0 %2142, %v1515
      %v2144 = vpop.permute.xlu0 %2143
      %vm2146 = vcmask 195584
      %v2148 = vsel %vm2146, %v2141, 0
      %2150 = vmatprep.subr.mxu0 0.0
      %2151 = vmatpush1.msra.mxu0 0.0
      %2152 = vmatprep.subr.mxu0 0.0
      %2153 = vmatpush1.msra.mxu0 0.0
      %2154 = vmatprep.subr.mxu0 0.0
      %2155 = vmatpush1.msra.mxu0 0.0
      %2156 = vmatprep.subr.mxu0 0.0
      %2157 = vmatpush1.msra.mxu0 0.0
      %2158 = vmatprep.subr.mxu0 0.0
      %2159 = vmatpush1.msra.mxu0 0.0
      %2160 = vmatprep.subr.mxu0 0.0
      %2161 = vmatpush1.msra.mxu0 0.0
      %2162 = vmatprep.subr.mxu0 0.0
      %2163 = vmatpush1.msra.mxu0 0.0
      %2164 = vmatprep.subr.mxu0 0.0
      %2165 = vmatpush1.msra.mxu0 0.0
      %2166 = vmatprep.subr.mxu0 0.0
      %2167 = vmatpush1.msra.mxu0 0.0
      %2168 = vmatprep.subr.mxu0 0.0
      %2169 = vmatpush1.msra.mxu0 0.0
      %2170 = vmatprep.subr.mxu0 0.0
      %2171 = vmatpush1.msra.mxu0 0.0
      %2172 = vmatprep.subr.mxu0 0.0
      %2173 = vmatpush1.msra.mxu0 0.0
      %2174 = vmatprep.subr.mxu0 0.0
      %2175 = vmatpush1.msra.mxu0 0.0
      %2176 = vmatprep.subr.mxu0 %v1818
      %2177 = vmatpush1.msra.mxu0 %v1817
      %2178 = vmatprep.subr.mxu0 %v1826
      %2179 = vmatpush1.msra.mxu0 %v1825
      %2180 = vmatprep.subr.mxu0 %v1499
      %2181 = vmatpush1.msra.mxu0 %v1498
      %2182 = vmatprep.subr.mxu0 0.0
      %2183 = vmatpush2.msra.mxu0 0.0
      %2184 = vmatprep.subr.mxu0 0.0
      %2185 = vmatpush2.msra.mxu0 0.0
      %2186 = vmatprep.subr.mxu0 0.0
      %2187 = vmatpush2.msra.mxu0 0.0
      %2188 = vmatprep.subr.mxu0 0.0
      %2189 = vmatpush2.msra.mxu0 0.0
      %2190 = vmatprep.subr.mxu0 0.0
      %2191 = vmatpush2.msra.mxu0 0.0
      %2192 = vmatprep.subr.mxu0 0.0
      %2193 = vmatpush2.msra.mxu0 0.0
      %2194 = vmatprep.subr.mxu0 0.0
      %2195 = vmatpush2.msra.mxu0 0.0
      %2196 = vmatprep.subr.mxu0 0.0
      %2197 = vmatpush2.msra.mxu0 0.0
      %2198 = vmatprep.subr.mxu0 0.0
      %2199 = vmatpush2.msra.mxu0 0.0
      %2200 = vmatprep.subr.mxu0 0.0
      %2201 = vmatpush2.msra.mxu0 0.0
      %2202 = vmatprep.subr.mxu0 0.0
      %2203 = vmatpush2.msra.mxu0 0.0
      %2204 = vmatprep.subr.mxu0 0.0
      %2205 = vmatpush2.msra.mxu0 0.0
      %2206 = vmatprep.subr.mxu0 0.0
      %2207 = vmatpush2.msra.mxu0 0.0
      %2208 = vmatprep.subr.mxu0 0.0
      %2209 = vmatpush2.msra.mxu0 0.0
      %2210 = vmatprep.subr.mxu0 0.0
      %2211 = vmatpush2.msra.mxu0 0.0
      %2212 = vmatprep.subr.mxu0 0.0
      %2213 = vmatpush2.msra.mxu0 0.0
      %2214 = vmatprep.mubr.f32.mxu0 0.0
      %2215 = vmatmul.mubr.f32.gmra.mxu0 %v2148
      %v2216 = vpop.f32.mrf.mxu0
      %v2217 = vadd.f32 %v2144, %v2216
      %v2218 = vpop.f32.mrf.mxu0
      %v2219 = vadd.f32 %v2144, %v2218
      %2220 = vdwg.mxu0
      %2221 = vmatprep.subr.mxu0 0.0
      %2222 = vmatpush1.msra.mxu0 0.0
      %2223 = vmatprep.subr.mxu0 0.0
      %2224 = vmatpush1.msra.mxu0 0.0
      %2225 = vmatprep.subr.mxu0 0.0
      %2226 = vmatpush1.msra.mxu0 0.0
      %2227 = vmatprep.subr.mxu0 0.0
      %2228 = vmatpush1.msra.mxu0 0.0
      %2229 = vmatprep.subr.mxu0 0.0
      %2230 = vmatpush1.msra.mxu0 0.0
      %2231 = vmatprep.subr.mxu0 0.0
      %2232 = vmatpush1.msra.mxu0 0.0
      %2233 = vmatprep.subr.mxu0 0.0
      %2234 = vmatpush1.msra.mxu0 0.0
      %2235 = vmatprep.subr.mxu0 0.0
      %2236 = vmatpush1.msra.mxu0 0.0
      %2237 = vmatprep.subr.mxu0 0.0
      %2238 = vmatpush1.msra.mxu0 0.0
      %2239 = vmatprep.subr.mxu0 0.0
      %2240 = vmatpush1.msra.mxu0 0.0
      %2241 = vmatprep.subr.mxu0 0.0
      %2242 = vmatpush1.msra.mxu0 0.0
      %2243 = vmatprep.subr.mxu0 0.0
      %2244 = vmatpush1.msra.mxu0 0.0
      %2245 = vmatprep.subr.mxu0 0.0
      %2246 = vmatpush1.msra.mxu0 0.0
      %2247 = vmatprep.subr.mxu0 %v1820
      %2248 = vmatpush1.msra.mxu0 %v1819
      %2249 = vmatprep.subr.mxu0 %v1828
      %2250 = vmatpush1.msra.mxu0 %v1827
      %2251 = vmatprep.subr.mxu0 %v1501
      %2252 = vmatpush1.msra.mxu0 %v1500
      %2253 = vmatprep.subr.mxu0 0.0
      %2254 = vmatpush2.msra.mxu0 0.0
      %2255 = vmatprep.subr.mxu0 0.0
      %2256 = vmatpush2.msra.mxu0 0.0
      %2257 = vmatprep.subr.mxu0 0.0
      %2258 = vmatpush2.msra.mxu0 0.0
      %2259 = vmatprep.subr.mxu0 0.0
      %2260 = vmatpush2.msra.mxu0 0.0
      %2261 = vmatprep.subr.mxu0 0.0
      %2262 = vmatpush2.msra.mxu0 0.0
      %2263 = vmatprep.subr.mxu0 0.0
      %2264 = vmatpush2.msra.mxu0 0.0
      %2265 = vmatprep.subr.mxu0 0.0
      %2266 = vmatpush2.msra.mxu0 0.0
      %2267 = vmatprep.subr.mxu0 0.0
      %2268 = vmatpush2.msra.mxu0 0.0
      %2269 = vmatprep.subr.mxu0 0.0
      %2270 = vmatpush2.msra.mxu0 0.0
      %2271 = vmatprep.subr.mxu0 0.0
      %2272 = vmatpush2.msra.mxu0 0.0
      %2273 = vmatprep.subr.mxu0 0.0
      %2274 = vmatpush2.msra.mxu0 0.0
      %2275 = vmatprep.subr.mxu0 0.0
      %2276 = vmatpush2.msra.mxu0 0.0
      %2277 = vmatprep.subr.mxu0 0.0
      %2278 = vmatpush2.msra.mxu0 0.0
      %2279 = vmatprep.subr.mxu0 0.0
      %2280 = vmatpush2.msra.mxu0 0.0
      %2281 = vmatprep.subr.mxu0 0.0
      %2282 = vmatpush2.msra.mxu0 0.0
      %2283 = vmatprep.subr.mxu0 0.0
      %2284 = vmatpush2.msra.mxu0 0.0
      %2285 = vmatprep.mubr.f32.mxu0 0.0
      %2286 = vmatmul.mubr.f32.gmra.mxu0 %v2148
      %v2287 = vpop.f32.mrf.mxu0
      %v2288 = vadd.f32 %v2144, %v2287
      %v2289 = vpop.f32.mrf.mxu0
      %v2290 = vadd.f32 %v2144, %v2289
      %2291 = vdwg.mxu0
      %2292 = vmatprep.subr.mxu0 0.0
      %2293 = vmatpush1.msra.mxu0 0.0
      %2294 = vmatprep.subr.mxu0 0.0
      %2295 = vmatpush1.msra.mxu0 0.0
      %2296 = vmatprep.subr.mxu0 0.0
      %2297 = vmatpush1.msra.mxu0 0.0
      %2298 = vmatprep.subr.mxu0 0.0
      %2299 = vmatpush1.msra.mxu0 0.0
      %2300 = vmatprep.subr.mxu0 0.0
      %2301 = vmatpush1.msra.mxu0 0.0
      %2302 = vmatprep.subr.mxu0 0.0
      %2303 = vmatpush1.msra.mxu0 0.0
      %2304 = vmatprep.subr.mxu0 0.0
      %2305 = vmatpush1.msra.mxu0 0.0
      %2306 = vmatprep.subr.mxu0 0.0
      %2307 = vmatpush1.msra.mxu0 0.0
      %2308 = vmatprep.subr.mxu0 0.0
      %2309 = vmatpush1.msra.mxu0 0.0
      %2310 = vmatprep.subr.mxu0 0.0
      %2311 = vmatpush1.msra.mxu0 0.0
      %2312 = vmatprep.subr.mxu0 0.0
      %2313 = vmatpush1.msra.mxu0 0.0
      %2314 = vmatprep.subr.mxu0 0.0
      %2315 = vmatpush1.msra.mxu0 0.0
      %2316 = vmatprep.subr.mxu0 0.0
      %2317 = vmatpush1.msra.mxu0 0.0
      %2318 = vmatprep.subr.mxu0 %v1822
      %2319 = vmatpush1.msra.mxu0 %v1821
      %2320 = vmatprep.subr.mxu0 %v1830
      %2321 = vmatpush1.msra.mxu0 %v1829
      %2322 = vmatprep.subr.mxu0 %v1503
      %2323 = vmatpush1.msra.mxu0 %v1502
      %2324 = vmatprep.subr.mxu0 0.0
      %2325 = vmatpush2.msra.mxu0 0.0
      %2326 = vmatprep.subr.mxu0 0.0
      %2327 = vmatpush2.msra.mxu0 0.0
      %2328 = vmatprep.subr.mxu0 0.0
      %2329 = vmatpush2.msra.mxu0 0.0
      %2330 = vmatprep.subr.mxu0 0.0
      %2331 = vmatpush2.msra.mxu0 0.0
      %2332 = vmatprep.subr.mxu0 0.0
      %2333 = vmatpush2.msra.mxu0 0.0
      %2334 = vmatprep.subr.mxu0 0.0
      %2335 = vmatpush2.msra.mxu0 0.0
      %2336 = vmatprep.subr.mxu0 0.0
      %2337 = vmatpush2.msra.mxu0 0.0
      %2338 = vmatprep.subr.mxu0 0.0
      %2339 = vmatpush2.msra.mxu0 0.0
      %2340 = vmatprep.subr.mxu0 0.0
      %2341 = vmatpush2.msra.mxu0 0.0
      %2342 = vmatprep.subr.mxu0 0.0
      %2343 = vmatpush2.msra.mxu0 0.0
      %2344 = vmatprep.subr.mxu0 0.0
      %2345 = vmatpush2.msra.mxu0 0.0
      %2346 = vmatprep.subr.mxu0 0.0
      %2347 = vmatpush2.msra.mxu0 0.0
      %2348 = vmatprep.subr.mxu0 0.0
      %2349 = vmatpush2.msra.mxu0 0.0
      %2350 = vmatprep.subr.mxu0 0.0
      %2351 = vmatpush2.msra.mxu0 0.0
      %2352 = vmatprep.subr.mxu0 0.0
      %2353 = vmatpush2.msra.mxu0 0.0
      %2354 = vmatprep.subr.mxu0 0.0
      %2355 = vmatpush2.msra.mxu0 0.0
      %2356 = vmatprep.mubr.f32.mxu0 0.0
      %2357 = vmatmul.mubr.f32.gmra.mxu0 %v2148
      %v2358 = vpop.f32.mrf.mxu0
      %v2359 = vadd.f32 %v2144, %v2358
      %v2360 = vpop.f32.mrf.mxu0
      %v2361 = vadd.f32 %v2144, %v2360
      %2362 = vdwg.mxu0
      %2363 = vmatprep.subr.mxu0 0.0
      %2364 = vmatpush1.msra.mxu0 0.0
      %2365 = vmatprep.subr.mxu0 0.0
      %2366 = vmatpush1.msra.mxu0 0.0
      %2367 = vmatprep.subr.mxu0 0.0
      %2368 = vmatpush1.msra.mxu0 0.0
      %2369 = vmatprep.subr.mxu0 0.0
      %2370 = vmatpush1.msra.mxu0 0.0
      %2371 = vmatprep.subr.mxu0 0.0
      %2372 = vmatpush1.msra.mxu0 0.0
      %2373 = vmatprep.subr.mxu0 0.0
      %2374 = vmatpush1.msra.mxu0 0.0
      %2375 = vmatprep.subr.mxu0 0.0
      %2376 = vmatpush1.msra.mxu0 0.0
      %2377 = vmatprep.subr.mxu0 0.0
      %2378 = vmatpush1.msra.mxu0 0.0
      %2379 = vmatprep.subr.mxu0 0.0
      %2380 = vmatpush1.msra.mxu0 0.0
      %2381 = vmatprep.subr.mxu0 0.0
      %2382 = vmatpush1.msra.mxu0 0.0
      %2383 = vmatprep.subr.mxu0 0.0
      %2384 = vmatpush1.msra.mxu0 0.0
      %2385 = vmatprep.subr.mxu0 0.0
      %2386 = vmatpush1.msra.mxu0 0.0
      %2387 = vmatprep.subr.mxu0 0.0
      %2388 = vmatpush1.msra.mxu0 0.0
      %2389 = vmatprep.subr.mxu0 %v1824
      %2390 = vmatpush1.msra.mxu0 %v1823
      %2391 = vmatprep.subr.mxu0 %v1832
      %2392 = vmatpush1.msra.mxu0 %v1831
      %2393 = vmatprep.subr.mxu0 %v1505
      %2394 = vmatpush1.msra.mxu0 %v1504
      %2395 = vmatprep.subr.mxu0 0.0
      %2396 = vmatpush2.msra.mxu0 0.0
      %2397 = vmatprep.subr.mxu0 0.0
      %2398 = vmatpush2.msra.mxu0 0.0
      %2399 = vmatprep.subr.mxu0 0.0
      %2400 = vmatpush2.msra.mxu0 0.0
      %2401 = vmatprep.subr.mxu0 0.0
      %2402 = vmatpush2.msra.mxu0 0.0
      %2403 = vmatprep.subr.mxu0 0.0
      %2404 = vmatpush2.msra.mxu0 0.0
      %2405 = vmatprep.subr.mxu0 0.0
      %2406 = vmatpush2.msra.mxu0 0.0
      %2407 = vmatprep.subr.mxu0 0.0
      %2408 = vmatpush2.msra.mxu0 0.0
      %2409 = vmatprep.subr.mxu0 0.0
      %2410 = vmatpush2.msra.mxu0 0.0
      %2411 = vmatprep.subr.mxu0 0.0
      %2412 = vmatpush2.msra.mxu0 0.0
      %2413 = vmatprep.subr.mxu0 0.0
      %2414 = vmatpush2.msra.mxu0 0.0
      %2415 = vmatprep.subr.mxu0 0.0
      %2416 = vmatpush2.msra.mxu0 0.0
      %2417 = vmatprep.subr.mxu0 0.0
      %2418 = vmatpush2.msra.mxu0 0.0
      %2419 = vmatprep.subr.mxu0 0.0
      %2420 = vmatpush2.msra.mxu0 0.0
      %2421 = vmatprep.subr.mxu0 0.0
      %2422 = vmatpush2.msra.mxu0 0.0
      %2423 = vmatprep.subr.mxu0 0.0
      %2424 = vmatpush2.msra.mxu0 0.0
      %2425 = vmatprep.subr.mxu0 0.0
      %2426 = vmatpush2.msra.mxu0 0.0
      %2427 = vmatprep.mubr.f32.mxu0 0.0
      %2428 = vmatmul.mubr.f32.gmra.mxu0 %v2148
      %v2429 = vpop.f32.mrf.mxu0
      %v2430 = vadd.f32 %v2144, %v2429
      %v2431 = vpop.f32.mrf.mxu0
      %v2432 = vadd.f32 %v2144, %v2431
      %2433 = vdwg.mxu0
      %v2434 = vadd.f32 %v2217, %v1281
      %v2435 = vadd.f32 %v2219, %v1283
      %v2436 = vadd.f32 %v2288, %v1352
      %v2437 = vadd.f32 %v2290, %v1354
      %v2438 = vadd.f32 %v2359, %v1423
      %v2439 = vadd.f32 %v2361, %v1425
      %v2440 = vadd.f32 %v2430, %v1494
      %v2441 = vadd.f32 %v2432, %v1496
      %v2442 = vadd.f32 %v2434, %v2133
      %v2443 = vadd.f32 %v2435, %v2134
      %v2444 = vadd.f32 %v2436, %v2135
      %v2445 = vadd.f32 %v2437, %v2136
      %v2446 = vadd.f32 %v2438, %v2137
      %v2447 = vadd.f32 %v2439, %v2138
      %v2448 = vadd.f32 %v2440, %v2139
      %v2449 = vadd.f32 %v2441, %v2140
      %v2450 = vmax.f32 %v2133, 0.0
      %v2451 = vmax.f32 %v2134, 0.0
      %v2452 = vmax.f32 %v2135, 0.0
      %v2453 = vmax.f32 %v2136, 0.0
      %v2454 = vmax.f32 %v2137, 0.0
      %v2455 = vmax.f32 %v2138, 0.0
      %v2456 = vmax.f32 %v2139, 0.0
      %v2457 = vmax.f32 %v2140, 0.0
      %v2458 = vld [vmem:[%s10] sm:$0xff]
      %2459 = vset.pattern.permute.xlu0 3
      %2460 = vperm.xlu0 %2459, %v1515
      %v2461 = vpop.permute.xlu0 %2460
      %v2464 = vsel %vm2146, %v2458, 0
      %2466 = vmatprep.subr.mxu0 0.0
      %2467 = vmatpush1.msra.mxu0 0.0
      %2468 = vmatprep.subr.mxu0 0.0
      %2469 = vmatpush1.msra.mxu0 0.0
      %2470 = vmatprep.subr.mxu0 0.0
      %2471 = vmatpush1.msra.mxu0 0.0
      %2472 = vmatprep.subr.mxu0 0.0
      %2473 = vmatpush1.msra.mxu0 0.0
      %2474 = vmatprep.subr.mxu0 0.0
      %2475 = vmatpush1.msra.mxu0 0.0
      %2476 = vmatprep.subr.mxu0 0.0
      %2477 = vmatpush1.msra.mxu0 0.0
      %2478 = vmatprep.subr.mxu0 0.0
      %2479 = vmatpush1.msra.mxu0 0.0
      %2480 = vmatprep.subr.mxu0 0.0
      %2481 = vmatpush1.msra.mxu0 0.0
      %2482 = vmatprep.subr.mxu0 0.0
      %2483 = vmatpush1.msra.mxu0 0.0
      %2484 = vmatprep.subr.mxu0 0.0
      %2485 = vmatpush1.msra.mxu0 0.0
      %2486 = vmatprep.subr.mxu0 0.0
      %2487 = vmatpush1.msra.mxu0 0.0
      %2488 = vmatprep.subr.mxu0 0.0
      %2489 = vmatpush1.msra.mxu0 0.0
      %2490 = vmatprep.subr.mxu0 0.0
      %2491 = vmatpush1.msra.mxu0 0.0
      %2492 = vmatprep.subr.mxu0 %v2451
      %2493 = vmatpush1.msra.mxu0 %v2450
      %2494 = vmatprep.subr.mxu0 %v1507
      %2495 = vmatpush1.msra.mxu0 %v1506
      %2496 = vmatprep.subr.mxu0 %v1818
      %2497 = vmatpush1.msra.mxu0 %v1817
      %2498 = vmatprep.subr.mxu0 0.0
      %2499 = vmatpush2.msra.mxu0 0.0
      %2500 = vmatprep.subr.mxu0 0.0
      %2501 = vmatpush2.msra.mxu0 0.0
      %2502 = vmatprep.subr.mxu0 0.0
      %2503 = vmatpush2.msra.mxu0 0.0
      %2504 = vmatprep.subr.mxu0 0.0
      %2505 = vmatpush2.msra.mxu0 0.0
      %2506 = vmatprep.subr.mxu0 0.0
      %2507 = vmatpush2.msra.mxu0 0.0
      %2508 = vmatprep.subr.mxu0 0.0
      %2509 = vmatpush2.msra.mxu0 0.0
      %2510 = vmatprep.subr.mxu0 0.0
      %2511 = vmatpush2.msra.mxu0 0.0
      %2512 = vmatprep.subr.mxu0 0.0
      %2513 = vmatpush2.msra.mxu0 0.0
      %2514 = vmatprep.subr.mxu0 0.0
      %2515 = vmatpush2.msra.mxu0 0.0
      %2516 = vmatprep.subr.mxu0 0.0
      %2517 = vmatpush2.msra.mxu0 0.0
      %2518 = vmatprep.subr.mxu0 0.0
      %2519 = vmatpush2.msra.mxu0 0.0
      %2520 = vmatprep.subr.mxu0 0.0
      %2521 = vmatpush2.msra.mxu0 0.0
      %2522 = vmatprep.subr.mxu0 0.0
      %2523 = vmatpush2.msra.mxu0 0.0
      %2524 = vmatprep.subr.mxu0 0.0
      %2525 = vmatpush2.msra.mxu0 0.0
      %2526 = vmatprep.subr.mxu0 0.0
      %2527 = vmatpush2.msra.mxu0 0.0
      %2528 = vmatprep.subr.mxu0 0.0
      %2529 = vmatpush2.msra.mxu0 0.0
      %2530 = vmatprep.mubr.f32.mxu0 0.0
      %2531 = vmatmul.mubr.f32.gmra.mxu0 %v2464
      %v2532 = vpop.f32.mrf.mxu0
      %v2533 = vadd.f32 %v2461, %v2532
      %v2534 = vpop.f32.mrf.mxu0
      %v2535 = vadd.f32 %v2461, %v2534
      %2536 = vdwg.mxu0
      %2537 = vmatprep.subr.mxu0 0.0
      %2538 = vmatpush1.msra.mxu0 0.0
      %2539 = vmatprep.subr.mxu0 0.0
      %2540 = vmatpush1.msra.mxu0 0.0
      %2541 = vmatprep.subr.mxu0 0.0
      %2542 = vmatpush1.msra.mxu0 0.0
      %2543 = vmatprep.subr.mxu0 0.0
      %2544 = vmatpush1.msra.mxu0 0.0
      %2545 = vmatprep.subr.mxu0 0.0
      %2546 = vmatpush1.msra.mxu0 0.0
      %2547 = vmatprep.subr.mxu0 0.0
      %2548 = vmatpush1.msra.mxu0 0.0
      %2549 = vmatprep.subr.mxu0 0.0
      %2550 = vmatpush1.msra.mxu0 0.0
      %2551 = vmatprep.subr.mxu0 0.0
      %2552 = vmatpush1.msra.mxu0 0.0
      %2553 = vmatprep.subr.mxu0 0.0
      %2554 = vmatpush1.msra.mxu0 0.0
      %2555 = vmatprep.subr.mxu0 0.0
      %2556 = vmatpush1.msra.mxu0 0.0
      %2557 = vmatprep.subr.mxu0 0.0
      %2558 = vmatpush1.msra.mxu0 0.0
      %2559 = vmatprep.subr.mxu0 0.0
      %2560 = vmatpush1.msra.mxu0 0.0
      %2561 = vmatprep.subr.mxu0 0.0
      %2562 = vmatpush1.msra.mxu0 0.0
      %2563 = vmatprep.subr.mxu0 %v2453
      %2564 = vmatpush1.msra.mxu0 %v2452
      %2565 = vmatprep.subr.mxu0 %v1509
      %2566 = vmatpush1.msra.mxu0 %v1508
      %2567 = vmatprep.subr.mxu0 %v1820
      %2568 = vmatpush1.msra.mxu0 %v1819
      %2569 = vmatprep.subr.mxu0 0.0
      %2570 = vmatpush2.msra.mxu0 0.0
      %2571 = vmatprep.subr.mxu0 0.0
      %2572 = vmatpush2.msra.mxu0 0.0
      %2573 = vmatprep.subr.mxu0 0.0
      %2574 = vmatpush2.msra.mxu0 0.0
      %2575 = vmatprep.subr.mxu0 0.0
      %2576 = vmatpush2.msra.mxu0 0.0
      %2577 = vmatprep.subr.mxu0 0.0
      %2578 = vmatpush2.msra.mxu0 0.0
      %2579 = vmatprep.subr.mxu0 0.0
      %2580 = vmatpush2.msra.mxu0 0.0
      %2581 = vmatprep.subr.mxu0 0.0
      %2582 = vmatpush2.msra.mxu0 0.0
      %2583 = vmatprep.subr.mxu0 0.0
      %2584 = vmatpush2.msra.mxu0 0.0
      %2585 = vmatprep.subr.mxu0 0.0
      %2586 = vmatpush2.msra.mxu0 0.0
      %2587 = vmatprep.subr.mxu0 0.0
      %2588 = vmatpush2.msra.mxu0 0.0
      %2589 = vmatprep.subr.mxu0 0.0
      %2590 = vmatpush2.msra.mxu0 0.0
      %2591 = vmatprep.subr.mxu0 0.0
      %2592 = vmatpush2.msra.mxu0 0.0
      %2593 = vmatprep.subr.mxu0 0.0
      %2594 = vmatpush2.msra.mxu0 0.0
      %2595 = vmatprep.subr.mxu0 0.0
      %2596 = vmatpush2.msra.mxu0 0.0
      %2597 = vmatprep.subr.mxu0 0.0
      %2598 = vmatpush2.msra.mxu0 0.0
      %2599 = vmatprep.subr.mxu0 0.0
      %2600 = vmatpush2.msra.mxu0 0.0
      %2601 = vmatprep.mubr.f32.mxu0 0.0
      %2602 = vmatmul.mubr.f32.gmra.mxu0 %v2464
      %v2603 = vpop.f32.mrf.mxu0
      %v2604 = vadd.f32 %v2461, %v2603
      %v2605 = vpop.f32.mrf.mxu0
      %v2606 = vadd.f32 %v2461, %v2605
      %2607 = vdwg.mxu0
      %2608 = vmatprep.subr.mxu0 0.0
      %2609 = vmatpush1.msra.mxu0 0.0
      %2610 = vmatprep.subr.mxu0 0.0
      %2611 = vmatpush1.msra.mxu0 0.0
      %2612 = vmatprep.subr.mxu0 0.0
      %2613 = vmatpush1.msra.mxu0 0.0
      %2614 = vmatprep.subr.mxu0 0.0
      %2615 = vmatpush1.msra.mxu0 0.0
      %2616 = vmatprep.subr.mxu0 0.0
      %2617 = vmatpush1.msra.mxu0 0.0
      %2618 = vmatprep.subr.mxu0 0.0
      %2619 = vmatpush1.msra.mxu0 0.0
      %2620 = vmatprep.subr.mxu0 0.0
      %2621 = vmatpush1.msra.mxu0 0.0
      %2622 = vmatprep.subr.mxu0 0.0
      %2623 = vmatpush1.msra.mxu0 0.0
      %2624 = vmatprep.subr.mxu0 0.0
      %2625 = vmatpush1.msra.mxu0 0.0
      %2626 = vmatprep.subr.mxu0 0.0
      %2627 = vmatpush1.msra.mxu0 0.0
      %2628 = vmatprep.subr.mxu0 0.0
      %2629 = vmatpush1.msra.mxu0 0.0
      %2630 = vmatprep.subr.mxu0 0.0
      %2631 = vmatpush1.msra.mxu0 0.0
      %2632 = vmatprep.subr.mxu0 0.0
      %2633 = vmatpush1.msra.mxu0 0.0
      %2634 = vmatprep.subr.mxu0 %v2455
      %2635 = vmatpush1.msra.mxu0 %v2454
      %2636 = vmatprep.subr.mxu0 %v1511
      %2637 = vmatpush1.msra.mxu0 %v1510
      %2638 = vmatprep.subr.mxu0 %v1822
      %2639 = vmatpush1.msra.mxu0 %v1821
      %2640 = vmatprep.subr.mxu0 0.0
      %2641 = vmatpush2.msra.mxu0 0.0
      %2642 = vmatprep.subr.mxu0 0.0
      %2643 = vmatpush2.msra.mxu0 0.0
      %2644 = vmatprep.subr.mxu0 0.0
      %2645 = vmatpush2.msra.mxu0 0.0
      %2646 = vmatprep.subr.mxu0 0.0
      %2647 = vmatpush2.msra.mxu0 0.0
      %2648 = vmatprep.subr.mxu0 0.0
      %2649 = vmatpush2.msra.mxu0 0.0
      %2650 = vmatprep.subr.mxu0 0.0
      %2651 = vmatpush2.msra.mxu0 0.0
      %2652 = vmatprep.subr.mxu0 0.0
      %2653 = vmatpush2.msra.mxu0 0.0
      %2654 = vmatprep.subr.mxu0 0.0
      %2655 = vmatpush2.msra.mxu0 0.0
      %2656 = vmatprep.subr.mxu0 0.0
      %2657 = vmatpush2.msra.mxu0 0.0
      %2658 = vmatprep.subr.mxu0 0.0
      %2659 = vmatpush2.msra.mxu0 0.0
      %2660 = vmatprep.subr.mxu0 0.0
      %2661 = vmatpush2.msra.mxu0 0.0
      %2662 = vmatprep.subr.mxu0 0.0
      %2663 = vmatpush2.msra.mxu0 0.0
      %2664 = vmatprep.subr.mxu0 0.0
      %2665 = vmatpush2.msra.mxu0 0.0
      %2666 = vmatprep.subr.mxu0 0.0
      %2667 = vmatpush2.msra.mxu0 0.0
      %2668 = vmatprep.subr.mxu0 0.0
      %2669 = vmatpush2.msra.mxu0 0.0
      %2670 = vmatprep.subr.mxu0 0.0
      %2671 = vmatpush2.msra.mxu0 0.0
      %2672 = vmatprep.mubr.f32.mxu0 0.0
      %2673 = vmatmul.mubr.f32.gmra.mxu0 %v2464
      %v2674 = vpop.f32.mrf.mxu0
      %v2675 = vadd.f32 %v2461, %v2674
      %v2676 = vpop.f32.mrf.mxu0
      %v2677 = vadd.f32 %v2461, %v2676
      %2678 = vdwg.mxu0
      %2679 = vmatprep.subr.mxu0 0.0
      %2680 = vmatpush1.msra.mxu0 0.0
      %2681 = vmatprep.subr.mxu0 0.0
      %2682 = vmatpush1.msra.mxu0 0.0
      %2683 = vmatprep.subr.mxu0 0.0
      %2684 = vmatpush1.msra.mxu0 0.0
      %2685 = vmatprep.subr.mxu0 0.0
      %2686 = vmatpush1.msra.mxu0 0.0
      %2687 = vmatprep.subr.mxu0 0.0
      %2688 = vmatpush1.msra.mxu0 0.0
      %2689 = vmatprep.subr.mxu0 0.0
      %2690 = vmatpush1.msra.mxu0 0.0
      %2691 = vmatprep.subr.mxu0 0.0
      %2692 = vmatpush1.msra.mxu0 0.0
      %2693 = vmatprep.subr.mxu0 0.0
      %2694 = vmatpush1.msra.mxu0 0.0
      %2695 = vmatprep.subr.mxu0 0.0
      %2696 = vmatpush1.msra.mxu0 0.0
      %2697 = vmatprep.subr.mxu0 0.0
      %2698 = vmatpush1.msra.mxu0 0.0
      %2699 = vmatprep.subr.mxu0 0.0
      %2700 = vmatpush1.msra.mxu0 0.0
      %2701 = vmatprep.subr.mxu0 0.0
      %2702 = vmatpush1.msra.mxu0 0.0
      %2703 = vmatprep.subr.mxu0 0.0
      %2704 = vmatpush1.msra.mxu0 0.0
      %2705 = vmatprep.subr.mxu0 %v2457
      %2706 = vmatpush1.msra.mxu0 %v2456
      %2707 = vmatprep.subr.mxu0 %v1513
      %2708 = vmatpush1.msra.mxu0 %v1512
      %2709 = vmatprep.subr.mxu0 %v1824
      %2710 = vmatpush1.msra.mxu0 %v1823
      %2711 = vmatprep.subr.mxu0 0.0
      %2712 = vmatpush2.msra.mxu0 0.0
      %2713 = vmatprep.subr.mxu0 0.0
      %2714 = vmatpush2.msra.mxu0 0.0
      %2715 = vmatprep.subr.mxu0 0.0
      %2716 = vmatpush2.msra.mxu0 0.0
      %2717 = vmatprep.subr.mxu0 0.0
      %2718 = vmatpush2.msra.mxu0 0.0
      %2719 = vmatprep.subr.mxu0 0.0
      %2720 = vmatpush2.msra.mxu0 0.0
      %2721 = vmatprep.subr.mxu0 0.0
      %2722 = vmatpush2.msra.mxu0 0.0
      %2723 = vmatprep.subr.mxu0 0.0
      %2724 = vmatpush2.msra.mxu0 0.0
      %2725 = vmatprep.subr.mxu0 0.0
      %2726 = vmatpush2.msra.mxu0 0.0
      %2727 = vmatprep.subr.mxu0 0.0
      %2728 = vmatpush2.msra.mxu0 0.0
      %2729 = vmatprep.subr.mxu0 0.0
      %2730 = vmatpush2.msra.mxu0 0.0
      %2731 = vmatprep.subr.mxu0 0.0
      %2732 = vmatpush2.msra.mxu0 0.0
      %2733 = vmatprep.subr.mxu0 0.0
      %2734 = vmatpush2.msra.mxu0 0.0
      %2735 = vmatprep.subr.mxu0 0.0
      %2736 = vmatpush2.msra.mxu0 0.0
      %2737 = vmatprep.subr.mxu0 0.0
      %2738 = vmatpush2.msra.mxu0 0.0
      %2739 = vmatprep.subr.mxu0 0.0
      %2740 = vmatpush2.msra.mxu0 0.0
      %2741 = vmatprep.subr.mxu0 0.0
      %2742 = vmatpush2.msra.mxu0 0.0
      %2743 = vmatprep.mubr.f32.mxu0 0.0
      %2744 = vmatmul.mubr.f32.gmra.mxu0 %v2464
      %v2745 = vpop.f32.mrf.mxu0
      %v2746 = vadd.f32 %v2461, %v2745
      %v2747 = vpop.f32.mrf.mxu0
      %v2748 = vadd.f32 %v2461, %v2747
      %2749 = vdwg.mxu0
      %v2750 = vadd.f32 %v2533, %v636
      %v2751 = vadd.f32 %v2535, %v638
      %v2752 = vadd.f32 %v2604, %v707
      %v2753 = vadd.f32 %v2606, %v709
      %v2754 = vadd.f32 %v2675, %v778
      %v2755 = vadd.f32 %v2677, %v780
      %v2756 = vadd.f32 %v2746, %v849
      %v2757 = vadd.f32 %v2748, %v851
      %v2758 = vadd.f32 %v2750, %v1809
      %v2759 = vadd.f32 %v2751, %v1810
      %v2760 = vadd.f32 %v2752, %v1811
      %v2761 = vadd.f32 %v2753, %v1812
      %v2762 = vadd.f32 %v2754, %v1813
      %v2763 = vadd.f32 %v2755, %v1814
      %v2764 = vadd.f32 %v2756, %v1815
      %v2765 = vadd.f32 %v2757, %v1816
      %v2766 = vadd.f32 %v2758, %v2442
      %v2767 = vadd.f32 %v2759, %v2443
      %v2768 = vadd.f32 %v2760, %v2444
      %v2769 = vadd.f32 %v2761, %v2445
      %v2770 = vadd.f32 %v2762, %v2446
      %v2771 = vadd.f32 %v2763, %v2447
      %v2772 = vadd.f32 %v2764, %v2448
      %v2773 = vadd.f32 %v2765, %v2449
      %2774 = vst [vmem:[%s523] sm:$0xff] %v1809
      %2775 = vst [vmem:[%s523 + $0x8] sm:$0xff] %v1810
      %2776 = vst [vmem:[%s523 + $0x10] sm:$0xff] %v1811
      %2777 = vst [vmem:[%s523 + $0x18] sm:$0xff] %v1812
      %2778 = vst [vmem:[%s523 + $0x20] sm:$0xff] %v1813
      %2779 = vst [vmem:[%s523 + $0x28] sm:$0xff] %v1814
      %2780 = vst [vmem:[%s523 + $0x30] sm:$0xff] %v1815
      %2781 = vst [vmem:[%s523 + $0x38] sm:$0xff] %v1816
      %2782 = vst [vmem:[%s523 + $0x40] sm:$0xff] %v2133
      %2783 = vst [vmem:[%s523 + $0x48] sm:$0xff] %v2134
      %2784 = vst [vmem:[%s523 + $0x50] sm:$0xff] %v2135
      %2785 = vst [vmem:[%s523 + $0x58] sm:$0xff] %v2136
      %2786 = vst [vmem:[%s523 + $0x60] sm:$0xff] %v2137
      %2787 = vst [vmem:[%s523 + $0x68] sm:$0xff] %v2138
      %2788 = vst [vmem:[%s523 + $0x70] sm:$0xff] %v2139
      %2789 = vst [vmem:[%s523 + $0x78] sm:$0xff] %v2140
      %2790 = vst [vmem:[%s523 + $0x80] sm:$0xff] %v2442
      %2791 = vst [vmem:[%s523 + $0x88] sm:$0xff] %v2443
      %2792 = vst [vmem:[%s523 + $0x90] sm:$0xff] %v2444
      %2793 = vst [vmem:[%s523 + $0x98] sm:$0xff] %v2445
      %2794 = vst [vmem:[%s523 + $0xa0] sm:$0xff] %v2446
      %2795 = vst [vmem:[%s523 + $0xa8] sm:$0xff] %v2447
      %2796 = vst [vmem:[%s523 + $0xb0] sm:$0xff] %v2448
      %2797 = vst [vmem:[%s523 + $0xb8] sm:$0xff] %v2449
      %2798 = vst [vmem:[%s523 + $0xc0] sm:$0xff] %v2766
      %2799 = vst [vmem:[%s523 + $0xc8] sm:$0xff] %v2767
      %2800 = vst [vmem:[%s523 + $0xd0] sm:$0xff] %v2768
      %2801 = vst [vmem:[%s523 + $0xd8] sm:$0xff] %v2769
      %2802 = vst [vmem:[%s523 + $0xe0] sm:$0xff] %v2770
      %2803 = vst [vmem:[%s523 + $0xe8] sm:$0xff] %v2771
      %2804 = vst [vmem:[%s523 + $0xf0] sm:$0xff] %v2772
      %2805 = vst [vmem:[%s523 + $0xf8] sm:$0xff] %v2773
      %s2806 = smul.u32 8, %s28
      %p2807 = scmp.lt.s32.totalorder %s27, 1
      %s2808 = scalar_select %p2807, %s27, 1
      %p2809 = scmp.lt.s32.totalorder %s2806, 7
      %s2810 = scalar_select %p2809, %s2806, 7
      %s2811 = smul.addr %s2808, 32
      %s2812 = sadd.s32 %s2810, %s2811
      %s2813 = smul.addr %s2812, 8
      %s2814 = scalar_lea.vmem %s12, %s2813
      // Predicated region
      $region69: #{cell_forward.1} parent=67 // pred_check
        %p2815 = pneg %p328
      $region70: #{cell_forward.1} parent=67 // pred_check_branch
        %2817 = sbr.rel (%p2815) target = $region72
      $region71: #{cell_forward.1} parent=67 // pred_region
        %s2818 = smul.u32 8, %s28
      $region72: #{cell_forward.1} parent=67 // pred_fallthru
        _
    $region68: #{cell_forward.1} parent=5 // pred_fallthru
      _
    %p2819 = scmp.le.s32.totalorder 2, %s18
    // Predicated region
    $region73: #{cell_forward.1} parent=5 // pred_check
      %p2820 = pneg %p2819
    $region74: #{cell_forward.1} parent=5 // pred_check_branch
      %2822 = sbr.rel (%p2820) target = $region76
    $region75: #{cell_forward.1} parent=5 // pred_region
      %s2823 = ssub.s32 %s18, 2
      // Predicated region
      $region77: #{cell_forward.1} parent=75 // pred_check
        %p2824 = pneg %p334
      $region78: #{cell_forward.1} parent=75 // pred_check_branch
        %2826 = sbr.rel (%p2824) target = $region80
      $region79: #{cell_forward.1} parent=75 // pred_region
        %s2827 = smul.u32 8, %s30
        %p2828 = scmp.lt.s32.totalorder %s29, 1
        %s2829 = scalar_select %p2828, %s29, 1
        %p2830 = scmp.lt.s32.totalorder %s2827, 7
        %s2831 = scalar_select %p2830, %s2827, 7
        %s2832 = smul.addr %s2829, 32
        %s2833 = sadd.s32 %s2831, %s2832
        %s2834 = smul.addr %s2833, 8
        %s2835 = scalar_lea.vmem %s12, %s2834
      $region80: #{cell_forward.1} parent=75 // pred_fallthru
        _
    $region76: #{cell_forward.1} parent=5 // pred_fallthru
      _
  $region6: #{cell_forward.1} parent=0 // loop_footer
    %s22 = sadd.s32 1, %s18
  $region7: #{cell_forward.1} parent=0 // loop_footer_branch
    %17 = sbr.rel target = $region3
  $region8: #{cell_forward.1} parent=0 // loop_exit
    _

</llo_original>
